<compile_context>
chip_gen: v7x
topology: tpu7x:2x2x1
jax: 0.10.0
libtpu: 0.0.40
codegen_flags: <defaults>
</compile_context>

<pallas_src>
import functools
import math

import jax
import jax.numpy as jnp
from jax import lax
from jax.experimental import pallas as pl
from jax.experimental.pallas import tpu as pltpu


def _round_up(x, m):
    return ((x + m - 1) // m) * m


def lstm_reg_kernel(x_ref, w_ih_ref, w_hh_ref, b_ref, w_reg_ref, b_reg_ref,
                    out_ref, xg_ref, hs_ref, *, seq_len, batch_p):
    """Single-layer LSTM + Linear head (all dims pre-padded in the wrapper).

    x_ref:     (S*Bp, I)    flattened, batch-padded input sequence
    w_ih_ref:  (I, 4*Hp)    transposed weight_ih_l0, gate-padded (order i,f,g,o)
    w_hh_ref:  (Hp, 4*Hp)   transposed weight_hh_l0, gate-padded
    b_ref:     (1, 4*Hp)    bias_ih_l0 + bias_hh_l0, gate-padded
    w_reg_ref: (Hp, O)      transposed Linear weight, row-padded
    b_reg_ref: (1, O)       Linear bias
    out_ref:   (S*Bp, O)    output (reshaped / batch-sliced in the wrapper)
    xg_ref:    (S*Bp, 4*Hp) VMEM scratch: precomputed x @ W_ih + b
    hs_ref:    (S*Bp, Hp)   VMEM scratch: all hidden states
    """
    Hp = w_hh_ref.shape[0]

    # ---- Pre-pass: input projection (+ bias) for ALL timesteps, one matmul.
    # Bias broadcast happens once here, not per loop iteration.
    xg_ref[...] = (
        jnp.dot(x_ref[...], w_ih_ref[...], preferred_element_type=jnp.float32)
        + b_ref[...]
    )

    w_hh = w_hh_ref[...]                       # keep resident across the loop

    def sigmoid_t(z):
        # sigmoid(x) = 0.5*(tanh(0.5*x)+1): a single EUP op (vs exp + recip).
        return 0.5 * jnp.tanh(0.5 * z) + 0.5

    def step(t, carry):
        h, c = carry                            # (Bp, Hp) each, live in vregs
        row = pl.multiple_of(t * batch_p, 8)
        gates = xg_ref[pl.ds(row, batch_p), :] + jnp.dot(
            h, w_hh, preferred_element_type=jnp.float32)        # (Bp, 4*Hp)
        # Hp is a multiple of 128 -> each gate slice is a lane-aligned view.
        i_g = sigmoid_t(gates[:, 0 * Hp:1 * Hp])
        f_g = sigmoid_t(gates[:, 1 * Hp:2 * Hp])
        g_g = jnp.tanh(gates[:, 2 * Hp:3 * Hp])
        o_g = sigmoid_t(gates[:, 3 * Hp:4 * Hp])
        c = f_g * c + i_g * g_g
        h = o_g * jnp.tanh(c)
        hs_ref[pl.ds(row, batch_p), :] = h      # lane-dense (Hp) store
        return (h, c)

    zero = jnp.zeros((batch_p, Hp), jnp.float32)   # h0 = c0 = 0 (torch default)
    lax.fori_loop(0, seq_len, step, (zero, zero),
                  unroll=True if seq_len <= 16 else 4)

    # ---- Regression head: single batched matmul + single store.
    out_ref[...] = (
        jnp.dot(hs_ref[...], w_reg_ref[...], preferred_element_type=jnp.float32)
        + b_reg_ref[...]
    )


@jax.jit
def lstm_reg_forward(x, w_ih, w_hh, b_ih, b_hh, w_reg, b_reg):
    """Forward pass of lstm_reg with PyTorch-layout parameters.

    x:     (S, B, I)
    w_ih:  (4H, I)   w_hh: (4H, H)   b_ih, b_hh: (4H,)   (gate order i, f, g, o)
    w_reg: (O, H)    b_reg: (O,)
    returns (S, B, O)
    """
    S, B, I = x.shape
    H = w_hh.shape[1]
    O = w_reg.shape[0]
    f32 = jnp.float32

    Bp = _round_up(max(B, 8), 8)        # full sublanes for VPU/EUP work
    Hp = _round_up(H, 128)              # lane-aligned gates
    G4 = 4 * Hp

    # --- pre-transposed, zero-padded (lane-aligned) parameters ---
    w_ih_p = jnp.pad(w_ih.T.astype(f32).reshape(I, 4, H),
                     ((0, 0), (0, 0), (0, Hp - H))).reshape(I, G4)
    w_hh_p = jnp.pad(w_hh.T.astype(f32).reshape(H, 4, H),
                     ((0, Hp - H), (0, 0), (0, Hp - H))).reshape(Hp, G4)
    b_p = jnp.pad((b_ih + b_hh).astype(f32).reshape(4, H),
                  ((0, 0), (0, Hp - H))).reshape(1, G4)
    w_reg_p = jnp.pad(w_reg.T.astype(f32), ((0, Hp - H), (0, 0)))   # (Hp, O)
    b_reg_p = b_reg.astype(f32).reshape(1, O)

    # --- batch-padded, flattened input ---
    x_p = jnp.pad(x.astype(f32),
                  ((0, 0), (0, Bp - B), (0, 0))).reshape(S * Bp, I)

    # Explicit VMEM budget (inputs + output + scratch) with headroom.
    elems = (S * Bp * I + I * G4 + Hp * G4 + G4 + Hp * O + O
             + S * Bp * O + S * Bp * G4 + S * Bp * Hp)
    vmem_limit = int(min(max(2 * 4 * elems + (4 << 20), 16 << 20), 48 << 20))

    kernel = functools.partial(lstm_reg_kernel, seq_len=S, batch_p=Bp)
    out2d = pl.pallas_call(
        kernel,
        out_shape=jax.ShapeDtypeStruct((S * Bp, O), f32),
        in_specs=[pl.BlockSpec(memory_space=pltpu.MemorySpace.VMEM)] * 6,
        out_specs=pl.BlockSpec(memory_space=pltpu.MemorySpace.VMEM),
        scratch_shapes=[
            pltpu.VMEM((S * Bp, G4), f32),   # precomputed x @ W_ih + b
            pltpu.VMEM((S * Bp, Hp), f32),   # all hidden states
        ],
        compiler_params=pltpu.CompilerParams(vmem_limit_bytes=vmem_limit),
    )(x_p, w_ih_p, w_hh_p, b_p, w_reg_p, b_reg_p)

    return out2d.reshape(S, Bp, O)[:, :B, :]


def lstm_reg_reference(x, w_ih, w_hh, b_ih, b_hh, w_reg, b_reg):
    """Pure-JAX reference replicating torch.nn.LSTM + nn.Linear semantics."""
    S, B, _ = x.shape
    H = w_hh.shape[1]
    w_ih_t, w_hh_t = w_ih.T, w_hh.T
    b = b_ih + b_hh

    def step(carry, x_t):
        h, c = carry
        gates = x_t @ w_ih_t + h @ w_hh_t + b
        i_g = jax.nn.sigmoid(gates[:, 0 * H:1 * H])
        f_g = jax.nn.sigmoid(gates[:, 1 * H:2 * H])
        g_g = jnp.tanh(gates[:, 2 * H:3 * H])
        o_g = jax.nn.sigmoid(gates[:, 3 * H:4 * H])
        c = f_g * c + i_g * g_g
        h = o_g * jnp.tanh(c)
        return (h, c), h

    init = (jnp.zeros((B, H), jnp.float32), jnp.zeros((B, H), jnp.float32))
    _, hs = lax.scan(step, init, x)                      # (S, B, H)
    y = hs.reshape(S * B, H) @ w_reg.T + b_reg           # same view/reshape as torch
    return y.reshape(S, B, -1)


if __name__ == "__main__":
    # Small shapes consistent with the module's forward: (seq, batch, input_size)
    SEQ, BATCH = 8, 2
    INPUT_SIZE, HIDDEN_SIZE, OUTPUT_SIZE = 4, 32, 1

    key = jax.random.PRNGKey(0)
    ks = jax.random.split(key, 7)
    bound = 1.0 / math.sqrt(HIDDEN_SIZE)   # PyTorch-style uniform(-1/sqrt(H), 1/sqrt(H))

    # LSTM parameters in PyTorch layout (gate order i, f, g, o).
    w_ih = jax.random.uniform(ks[0], (4 * HIDDEN_SIZE, INPUT_SIZE),
                              jnp.float32, -bound, bound)
    w_hh = jax.random.uniform(ks[1], (4 * HIDDEN_SIZE, HIDDEN_SIZE),
                              jnp.float32, -bound, bound)
    b_ih = jax.random.uniform(ks[2], (4 * HIDDEN_SIZE,), jnp.float32, -bound, bound)
    b_hh = jax.random.uniform(ks[3], (4 * HIDDEN_SIZE,), jnp.float32, -bound, bound)
    # Linear(hidden_size, output_size)
    w_reg = jax.random.uniform(ks[4], (OUTPUT_SIZE, HIDDEN_SIZE),
                               jnp.float32, -bound, bound)
    b_reg = jax.random.uniform(ks[5], (OUTPUT_SIZE,), jnp.float32, -bound, bound)

    x = jax.random.normal(ks[6], (SEQ, BATCH, INPUT_SIZE), jnp.float32)

    out = lstm_reg_forward(x, w_ih, w_hh, b_ih, b_hh, w_reg, b_reg)
    out = jax.block_until_ready(out)

    ref = lstm_reg_reference(x, w_ih, w_hh, b_ih, b_hh, w_reg, b_reg)
    assert out.shape == (SEQ, BATCH, OUTPUT_SIZE)
    assert jnp.allclose(out, ref, atol=1e-4, rtol=1e-4), "mismatch vs JAX reference"

    print("KERNEL_OK")
</pallas_src>

<mosaic_0001>
module attributes {stable_mosaic.version = 11 : i64} {
  func.func @lstm_reg_kernel(%arg0: memref<64x4xf32, #tpu.memory_space<vmem>>, %arg1: memref<4x512xf32, #tpu.memory_space<vmem>>, %arg2: memref<128x512xf32, #tpu.memory_space<vmem>>, %arg3: memref<1x512xf32, #tpu.memory_space<vmem>>, %arg4: memref<128x1xf32, #tpu.memory_space<vmem>>, %arg5: memref<1x1xf32, #tpu.memory_space<vmem>>, %arg6: memref<64x1xf32, #tpu.memory_space<vmem>>, %arg7: memref<64x512xf32, #tpu.memory_space<vmem>>, %arg8: memref<64x128xf32, #tpu.memory_space<vmem>>) attributes {dimension_semantics = [], scalar_prefetch = 0 : i64, scratch_operands = 2 : i64, tpu.core_type = #tpu.core_type<tc>} {
    %c0 = arith.constant 0 : index
    %c0_0 = arith.constant 0 : index
    %0 = vector.load %arg0[%c0, %c0_0] : memref<64x4xf32, #tpu.memory_space<vmem>>, vector<64x4xf32>
    %c0_1 = arith.constant 0 : index
    %c0_2 = arith.constant 0 : index
    %1 = vector.load %arg1[%c0_1, %c0_2] : memref<4x512xf32, #tpu.memory_space<vmem>>, vector<4x512xf32>
    %cst = arith.constant dense<0.000000e+00> : vector<64x512xf32>
    %2 = tpu.matmul %0, %1, %cst {dimension_numbers = #tpu.dot_dimension_numbers<[1], [0], [0], [1], [0, 0, 1, 1], [], []>} : vector<64x4xf32>, vector<4x512xf32>, vector<64x512xf32> -> vector<64x512xf32>
    %c0_3 = arith.constant 0 : index
    %c0_4 = arith.constant 0 : index
    %3 = vector.load %arg3[%c0_3, %c0_4] : memref<1x512xf32, #tpu.memory_space<vmem>>, vector<1x512xf32>
    %4 = vector.broadcast %3 : vector<1x512xf32> to vector<64x512xf32>
    %5 = arith.addf %2, %4 : vector<64x512xf32>
    %c0_5 = arith.constant 0 : index
    %c0_6 = arith.constant 0 : index
    %6 = vector.load %arg7[%c0_5, %c0_6] : memref<64x512xf32, #tpu.memory_space<vmem>>, vector<64x512xf32>
    tpu.vector_store %arg7[%c0_5, %c0_6], %5 {strides = array<i32>} : memref<64x512xf32, #tpu.memory_space<vmem>>, vector<64x512xf32>,
    %c0_7 = arith.constant 0 : index
    %c0_8 = arith.constant 0 : index
    %7 = vector.load %arg2[%c0_7, %c0_8] : memref<128x512xf32, #tpu.memory_space<vmem>>, vector<128x512xf32>
    %cst_9 = arith.constant 0.000000e+00 : f32
    %8 = vector.broadcast %cst_9 : f32 to vector<8x128xf32>
    %c0_i32 = arith.constant 0 : i32
    %c8_i32 = arith.constant 8 : i32
    %9 = arith.muli %c0_i32, %c8_i32 : i32
    %10 = tpu.assume_multiple %9, 8 : i32
    %11 = arith.index_cast %10 : i32 to index
    %c0_10 = arith.constant 0 : index
    %12 = vector.load %arg7[%11, %c0_10] : memref<64x512xf32, #tpu.memory_space<vmem>>, vector<8x512xf32>
    %cst_11 = arith.constant dense<0.000000e+00> : vector<8x512xf32>
    %13 = tpu.matmul %8, %7, %cst_11 {dimension_numbers = #tpu.dot_dimension_numbers<[1], [0], [0], [1], [0, 0, 1, 1], [], []>} : vector<8x128xf32>, vector<128x512xf32>, vector<8x512xf32> -> vector<8x512xf32>
    %14 = arith.addf %12, %13 : vector<8x512xf32>
    %15 = vector.extract_strided_slice %14 {offsets = [0, 0], sizes = [8, 128], strides = [1, 1]} : vector<8x512xf32> to vector<8x128xf32>
    %cst_12 = arith.constant 5.000000e-01 : f32
    %16 = vector.broadcast %cst_12 : f32 to vector<8x128xf32>
    %17 = arith.mulf %16, %15 : vector<8x128xf32>
    %18 = math.tanh %17 : vector<8x128xf32>
    %cst_13 = arith.constant 5.000000e-01 : f32
    %19 = vector.broadcast %cst_13 : f32 to vector<8x128xf32>
    %20 = arith.mulf %19, %18 : vector<8x128xf32>
    %cst_14 = arith.constant 5.000000e-01 : f32
    %21 = vector.broadcast %cst_14 : f32 to vector<8x128xf32>
    %22 = arith.addf %20, %21 : vector<8x128xf32>
    %23 = vector.extract_strided_slice %14 {offsets = [0, 128], sizes = [8, 128], strides = [1, 1]} : vector<8x512xf32> to vector<8x128xf32>
    %cst_15 = arith.constant 5.000000e-01 : f32
    %24 = vector.broadcast %cst_15 : f32 to vector<8x128xf32>
    %25 = arith.mulf %24, %23 : vector<8x128xf32>
    %26 = math.tanh %25 : vector<8x128xf32>
    %cst_16 = arith.constant 5.000000e-01 : f32
    %27 = vector.broadcast %cst_16 : f32 to vector<8x128xf32>
    %28 = arith.mulf %27, %26 : vector<8x128xf32>
    %cst_17 = arith.constant 5.000000e-01 : f32
    %29 = vector.broadcast %cst_17 : f32 to vector<8x128xf32>
    %30 = arith.addf %28, %29 : vector<8x128xf32>
    %31 = vector.extract_strided_slice %14 {offsets = [0, 256], sizes = [8, 128], strides = [1, 1]} : vector<8x512xf32> to vector<8x128xf32>
    %32 = math.tanh %31 : vector<8x128xf32>
    %33 = vector.extract_strided_slice %14 {offsets = [0, 384], sizes = [8, 128], strides = [1, 1]} : vector<8x512xf32> to vector<8x128xf32>
    %cst_18 = arith.constant 5.000000e-01 : f32
    %34 = vector.broadcast %cst_18 : f32 to vector<8x128xf32>
    %35 = arith.mulf %34, %33 : vector<8x128xf32>
    %36 = math.tanh %35 : vector<8x128xf32>
    %cst_19 = arith.constant 5.000000e-01 : f32
    %37 = vector.broadcast %cst_19 : f32 to vector<8x128xf32>
    %38 = arith.mulf %37, %36 : vector<8x128xf32>
    %cst_20 = arith.constant 5.000000e-01 : f32
    %39 = vector.broadcast %cst_20 : f32 to vector<8x128xf32>
    %40 = arith.addf %38, %39 : vector<8x128xf32>
    %41 = arith.mulf %30, %8 : vector<8x128xf32>
    %42 = arith.mulf %22, %32 : vector<8x128xf32>
    %43 = arith.addf %41, %42 : vector<8x128xf32>
    %44 = math.tanh %43 : vector<8x128xf32>
    %45 = arith.mulf %40, %44 : vector<8x128xf32>
    %46 = arith.index_cast %10 : i32 to index
    %c0_21 = arith.constant 0 : index
    %47 = vector.load %arg8[%46, %c0_21] : memref<64x128xf32, #tpu.memory_space<vmem>>, vector<8x128xf32>
    tpu.vector_store %arg8[%46, %c0_21], %45 {strides = array<i32>} : memref<64x128xf32, #tpu.memory_space<vmem>>, vector<8x128xf32>,
    %c1_i32 = arith.constant 1 : i32
    %c8_i32_22 = arith.constant 8 : i32
    %48 = arith.muli %c1_i32, %c8_i32_22 : i32
    %49 = tpu.assume_multiple %48, 8 : i32
    %50 = arith.index_cast %49 : i32 to index
    %c0_23 = arith.constant 0 : index
    %51 = vector.load %arg7[%50, %c0_23] : memref<64x512xf32, #tpu.memory_space<vmem>>, vector<8x512xf32>
    %cst_24 = arith.constant dense<0.000000e+00> : vector<8x512xf32>
    %52 = tpu.matmul %45, %7, %cst_24 {dimension_numbers = #tpu.dot_dimension_numbers<[1], [0], [0], [1], [0, 0, 1, 1], [], []>} : vector<8x128xf32>, vector<128x512xf32>, vector<8x512xf32> -> vector<8x512xf32>
    %53 = arith.addf %51, %52 : vector<8x512xf32>
    %54 = vector.extract_strided_slice %53 {offsets = [0, 0], sizes = [8, 128], strides = [1, 1]} : vector<8x512xf32> to vector<8x128xf32>
    %cst_25 = arith.constant 5.000000e-01 : f32
    %55 = vector.broadcast %cst_25 : f32 to vector<8x128xf32>
    %56 = arith.mulf %55, %54 : vector<8x128xf32>
    %57 = math.tanh %56 : vector<8x128xf32>
    %cst_26 = arith.constant 5.000000e-01 : f32
    %58 = vector.broadcast %cst_26 : f32 to vector<8x128xf32>
    %59 = arith.mulf %58, %57 : vector<8x128xf32>
    %cst_27 = arith.constant 5.000000e-01 : f32
    %60 = vector.broadcast %cst_27 : f32 to vector<8x128xf32>
    %61 = arith.addf %59, %60 : vector<8x128xf32>
    %62 = vector.extract_strided_slice %53 {offsets = [0, 128], sizes = [8, 128], strides = [1, 1]} : vector<8x512xf32> to vector<8x128xf32>
    %cst_28 = arith.constant 5.000000e-01 : f32
    %63 = vector.broadcast %cst_28 : f32 to vector<8x128xf32>
    %64 = arith.mulf %63, %62 : vector<8x128xf32>
    %65 = math.tanh %64 : vector<8x128xf32>
    %cst_29 = arith.constant 5.000000e-01 : f32
    %66 = vector.broadcast %cst_29 : f32 to vector<8x128xf32>
    %67 = arith.mulf %66, %65 : vector<8x128xf32>
    %cst_30 = arith.constant 5.000000e-01 : f32
    %68 = vector.broadcast %cst_30 : f32 to vector<8x128xf32>
    %69 = arith.addf %67, %68 : vector<8x128xf32>
    %70 = vector.extract_strided_slice %53 {offsets = [0, 256], sizes = [8, 128], strides = [1, 1]} : vector<8x512xf32> to vector<8x128xf32>
    %71 = math.tanh %70 : vector<8x128xf32>
    %72 = vector.extract_strided_slice %53 {offsets = [0, 384], sizes = [8, 128], strides = [1, 1]} : vector<8x512xf32> to vector<8x128xf32>
    %cst_31 = arith.constant 5.000000e-01 : f32
    %73 = vector.broadcast %cst_31 : f32 to vector<8x128xf32>
    %74 = arith.mulf %73, %72 : vector<8x128xf32>
    %75 = math.tanh %74 : vector<8x128xf32>
    %cst_32 = arith.constant 5.000000e-01 : f32
    %76 = vector.broadcast %cst_32 : f32 to vector<8x128xf32>
    %77 = arith.mulf %76, %75 : vector<8x128xf32>
    %cst_33 = arith.constant 5.000000e-01 : f32
    %78 = vector.broadcast %cst_33 : f32 to vector<8x128xf32>
    %79 = arith.addf %77, %78 : vector<8x128xf32>
    %80 = arith.mulf %69, %43 : vector<8x128xf32>
    %81 = arith.mulf %61, %71 : vector<8x128xf32>
    %82 = arith.addf %80, %81 : vector<8x128xf32>
    %83 = math.tanh %82 : vector<8x128xf32>
    %84 = arith.mulf %79, %83 : vector<8x128xf32>
    %85 = arith.index_cast %49 : i32 to index
    %c0_34 = arith.constant 0 : index
    %86 = vector.load %arg8[%85, %c0_34] : memref<64x128xf32, #tpu.memory_space<vmem>>, vector<8x128xf32>
    tpu.vector_store %arg8[%85, %c0_34], %84 {strides = array<i32>} : memref<64x128xf32, #tpu.memory_space<vmem>>, vector<8x128xf32>,
    %c2_i32 = arith.constant 2 : i32
    %c8_i32_35 = arith.constant 8 : i32
    %87 = arith.muli %c2_i32, %c8_i32_35 : i32
    %88 = tpu.assume_multiple %87, 8 : i32
    %89 = arith.index_cast %88 : i32 to index
    %c0_36 = arith.constant 0 : index
    %90 = vector.load %arg7[%89, %c0_36] : memref<64x512xf32, #tpu.memory_space<vmem>>, vector<8x512xf32>
    %cst_37 = arith.constant dense<0.000000e+00> : vector<8x512xf32>
    %91 = tpu.matmul %84, %7, %cst_37 {dimension_numbers = #tpu.dot_dimension_numbers<[1], [0], [0], [1], [0, 0, 1, 1], [], []>} : vector<8x128xf32>, vector<128x512xf32>, vector<8x512xf32> -> vector<8x512xf32>
    %92 = arith.addf %90, %91 : vector<8x512xf32>
    %93 = vector.extract_strided_slice %92 {offsets = [0, 0], sizes = [8, 128], strides = [1, 1]} : vector<8x512xf32> to vector<8x128xf32>
    %cst_38 = arith.constant 5.000000e-01 : f32
    %94 = vector.broadcast %cst_38 : f32 to vector<8x128xf32>
    %95 = arith.mulf %94, %93 : vector<8x128xf32>
    %96 = math.tanh %95 : vector<8x128xf32>
    %cst_39 = arith.constant 5.000000e-01 : f32
    %97 = vector.broadcast %cst_39 : f32 to vector<8x128xf32>
    %98 = arith.mulf %97, %96 : vector<8x128xf32>
    %cst_40 = arith.constant 5.000000e-01 : f32
    %99 = vector.broadcast %cst_40 : f32 to vector<8x128xf32>
    %100 = arith.addf %98, %99 : vector<8x128xf32>
    %101 = vector.extract_strided_slice %92 {offsets = [0, 128], sizes = [8, 128], strides = [1, 1]} : vector<8x512xf32> to vector<8x128xf32>
    %cst_41 = arith.constant 5.000000e-01 : f32
    %102 = vector.broadcast %cst_41 : f32 to vector<8x128xf32>
    %103 = arith.mulf %102, %101 : vector<8x128xf32>
    %104 = math.tanh %103 : vector<8x128xf32>
    %cst_42 = arith.constant 5.000000e-01 : f32
    %105 = vector.broadcast %cst_42 : f32 to vector<8x128xf32>
    %106 = arith.mulf %105, %104 : vector<8x128xf32>
    %cst_43 = arith.constant 5.000000e-01 : f32
    %107 = vector.broadcast %cst_43 : f32 to vector<8x128xf32>
    %108 = arith.addf %106, %107 : vector<8x128xf32>
    %109 = vector.extract_strided_slice %92 {offsets = [0, 256], sizes = [8, 128], strides = [1, 1]} : vector<8x512xf32> to vector<8x128xf32>
    %110 = math.tanh %109 : vector<8x128xf32>
    %111 = vector.extract_strided_slice %92 {offsets = [0, 384], sizes = [8, 128], strides = [1, 1]} : vector<8x512xf32> to vector<8x128xf32>
    %cst_44 = arith.constant 5.000000e-01 : f32
    %112 = vector.broadcast %cst_44 : f32 to vector<8x128xf32>
    %113 = arith.mulf %112, %111 : vector<8x128xf32>
    %114 = math.tanh %113 : vector<8x128xf32>
    %cst_45 = arith.constant 5.000000e-01 : f32
    %115 = vector.broadcast %cst_45 : f32 to vector<8x128xf32>
    %116 = arith.mulf %115, %114 : vector<8x128xf32>
    %cst_46 = arith.constant 5.000000e-01 : f32
    %117 = vector.broadcast %cst_46 : f32 to vector<8x128xf32>
    %118 = arith.addf %116, %117 : vector<8x128xf32>
    %119 = arith.mulf %108, %82 : vector<8x128xf32>
    %120 = arith.mulf %100, %110 : vector<8x128xf32>
    %121 = arith.addf %119, %120 : vector<8x128xf32>
    %122 = math.tanh %121 : vector<8x128xf32>
    %123 = arith.mulf %118, %122 : vector<8x128xf32>
    %124 = arith.index_cast %88 : i32 to index
    %c0_47 = arith.constant 0 : index
    %125 = vector.load %arg8[%124, %c0_47] : memref<64x128xf32, #tpu.memory_space<vmem>>, vector<8x128xf32>
    tpu.vector_store %arg8[%124, %c0_47], %123 {strides = array<i32>} : memref<64x128xf32, #tpu.memory_space<vmem>>, vector<8x128xf32>,
    %c3_i32 = arith.constant 3 : i32
    %c8_i32_48 = arith.constant 8 : i32
    %126 = arith.muli %c3_i32, %c8_i32_48 : i32
    %127 = tpu.assume_multiple %126, 8 : i32
    %128 = arith.index_cast %127 : i32 to index
    %c0_49 = arith.constant 0 : index
    %129 = vector.load %arg7[%128, %c0_49] : memref<64x512xf32, #tpu.memory_space<vmem>>, vector<8x512xf32>
    %cst_50 = arith.constant dense<0.000000e+00> : vector<8x512xf32>
    %130 = tpu.matmul %123, %7, %cst_50 {dimension_numbers = #tpu.dot_dimension_numbers<[1], [0], [0], [1], [0, 0, 1, 1], [], []>} : vector<8x128xf32>, vector<128x512xf32>, vector<8x512xf32> -> vector<8x512xf32>
    %131 = arith.addf %129, %130 : vector<8x512xf32>
    %132 = vector.extract_strided_slice %131 {offsets = [0, 0], sizes = [8, 128], strides = [1, 1]} : vector<8x512xf32> to vector<8x128xf32>
    %cst_51 = arith.constant 5.000000e-01 : f32
    %133 = vector.broadcast %cst_51 : f32 to vector<8x128xf32>
    %134 = arith.mulf %133, %132 : vector<8x128xf32>
    %135 = math.tanh %134 : vector<8x128xf32>
    %cst_52 = arith.constant 5.000000e-01 : f32
    %136 = vector.broadcast %cst_52 : f32 to vector<8x128xf32>
    %137 = arith.mulf %136, %135 : vector<8x128xf32>
    %cst_53 = arith.constant 5.000000e-01 : f32
    %138 = vector.broadcast %cst_53 : f32 to vector<8x128xf32>
    %139 = arith.addf %137, %138 : vector<8x128xf32>
    %140 = vector.extract_strided_slice %131 {offsets = [0, 128], sizes = [8, 128], strides = [1, 1]} : vector<8x512xf32> to vector<8x128xf32>
    %cst_54 = arith.constant 5.000000e-01 : f32
    %141 = vector.broadcast %cst_54 : f32 to vector<8x128xf32>
    %142 = arith.mulf %141, %140 : vector<8x128xf32>
    %143 = math.tanh %142 : vector<8x128xf32>
    %cst_55 = arith.constant 5.000000e-01 : f32
    %144 = vector.broadcast %cst_55 : f32 to vector<8x128xf32>
    %145 = arith.mulf %144, %143 : vector<8x128xf32>
    %cst_56 = arith.constant 5.000000e-01 : f32
    %146 = vector.broadcast %cst_56 : f32 to vector<8x128xf32>
    %147 = arith.addf %145, %146 : vector<8x128xf32>
    %148 = vector.extract_strided_slice %131 {offsets = [0, 256], sizes = [8, 128], strides = [1, 1]} : vector<8x512xf32> to vector<8x128xf32>
    %149 = math.tanh %148 : vector<8x128xf32>
    %150 = vector.extract_strided_slice %131 {offsets = [0, 384], sizes = [8, 128], strides = [1, 1]} : vector<8x512xf32> to vector<8x128xf32>
    %cst_57 = arith.constant 5.000000e-01 : f32
    %151 = vector.broadcast %cst_57 : f32 to vector<8x128xf32>
    %152 = arith.mulf %151, %150 : vector<8x128xf32>
    %153 = math.tanh %152 : vector<8x128xf32>
    %cst_58 = arith.constant 5.000000e-01 : f32
    %154 = vector.broadcast %cst_58 : f32 to vector<8x128xf32>
    %155 = arith.mulf %154, %153 : vector<8x128xf32>
    %cst_59 = arith.constant 5.000000e-01 : f32
    %156 = vector.broadcast %cst_59 : f32 to vector<8x128xf32>
    %157 = arith.addf %155, %156 : vector<8x128xf32>
    %158 = arith.mulf %147, %121 : vector<8x128xf32>
    %159 = arith.mulf %139, %149 : vector<8x128xf32>
    %160 = arith.addf %158, %159 : vector<8x128xf32>
    %161 = math.tanh %160 : vector<8x128xf32>
    %162 = arith.mulf %157, %161 : vector<8x128xf32>
    %163 = arith.index_cast %127 : i32 to index
    %c0_60 = arith.constant 0 : index
    %164 = vector.load %arg8[%163, %c0_60] : memref<64x128xf32, #tpu.memory_space<vmem>>, vector<8x128xf32>
    tpu.vector_store %arg8[%163, %c0_60], %162 {strides = array<i32>} : memref<64x128xf32, #tpu.memory_space<vmem>>, vector<8x128xf32>,
    %c4_i32 = arith.constant 4 : i32
    %c8_i32_61 = arith.constant 8 : i32
    %165 = arith.muli %c4_i32, %c8_i32_61 : i32
    %166 = tpu.assume_multiple %165, 8 : i32
    %167 = arith.index_cast %166 : i32 to index
    %c0_62 = arith.constant 0 : index
    %168 = vector.load %arg7[%167, %c0_62] : memref<64x512xf32, #tpu.memory_space<vmem>>, vector<8x512xf32>
    %cst_63 = arith.constant dense<0.000000e+00> : vector<8x512xf32>
    %169 = tpu.matmul %162, %7, %cst_63 {dimension_numbers = #tpu.dot_dimension_numbers<[1], [0], [0], [1], [0, 0, 1, 1], [], []>} : vector<8x128xf32>, vector<128x512xf32>, vector<8x512xf32> -> vector<8x512xf32>
    %170 = arith.addf %168, %169 : vector<8x512xf32>
    %171 = vector.extract_strided_slice %170 {offsets = [0, 0], sizes = [8, 128], strides = [1, 1]} : vector<8x512xf32> to vector<8x128xf32>
    %cst_64 = arith.constant 5.000000e-01 : f32
    %172 = vector.broadcast %cst_64 : f32 to vector<8x128xf32>
    %173 = arith.mulf %172, %171 : vector<8x128xf32>
    %174 = math.tanh %173 : vector<8x128xf32>
    %cst_65 = arith.constant 5.000000e-01 : f32
    %175 = vector.broadcast %cst_65 : f32 to vector<8x128xf32>
    %176 = arith.mulf %175, %174 : vector<8x128xf32>
    %cst_66 = arith.constant 5.000000e-01 : f32
    %177 = vector.broadcast %cst_66 : f32 to vector<8x128xf32>
    %178 = arith.addf %176, %177 : vector<8x128xf32>
    %179 = vector.extract_strided_slice %170 {offsets = [0, 128], sizes = [8, 128], strides = [1, 1]} : vector<8x512xf32> to vector<8x128xf32>
    %cst_67 = arith.constant 5.000000e-01 : f32
    %180 = vector.broadcast %cst_67 : f32 to vector<8x128xf32>
    %181 = arith.mulf %180, %179 : vector<8x128xf32>
    %182 = math.tanh %181 : vector<8x128xf32>
    %cst_68 = arith.constant 5.000000e-01 : f32
    %183 = vector.broadcast %cst_68 : f32 to vector<8x128xf32>
    %184 = arith.mulf %183, %182 : vector<8x128xf32>
    %cst_69 = arith.constant 5.000000e-01 : f32
    %185 = vector.broadcast %cst_69 : f32 to vector<8x128xf32>
    %186 = arith.addf %184, %185 : vector<8x128xf32>
    %187 = vector.extract_strided_slice %170 {offsets = [0, 256], sizes = [8, 128], strides = [1, 1]} : vector<8x512xf32> to vector<8x128xf32>
    %188 = math.tanh %187 : vector<8x128xf32>
    %189 = vector.extract_strided_slice %170 {offsets = [0, 384], sizes = [8, 128], strides = [1, 1]} : vector<8x512xf32> to vector<8x128xf32>
    %cst_70 = arith.constant 5.000000e-01 : f32
    %190 = vector.broadcast %cst_70 : f32 to vector<8x128xf32>
    %191 = arith.mulf %190, %189 : vector<8x128xf32>
    %192 = math.tanh %191 : vector<8x128xf32>
    %cst_71 = arith.constant 5.000000e-01 : f32
    %193 = vector.broadcast %cst_71 : f32 to vector<8x128xf32>
    %194 = arith.mulf %193, %192 : vector<8x128xf32>
    %cst_72 = arith.constant 5.000000e-01 : f32
    %195 = vector.broadcast %cst_72 : f32 to vector<8x128xf32>
    %196 = arith.addf %194, %195 : vector<8x128xf32>
    %197 = arith.mulf %186, %160 : vector<8x128xf32>
    %198 = arith.mulf %178, %188 : vector<8x128xf32>
    %199 = arith.addf %197, %198 : vector<8x128xf32>
    %200 = math.tanh %199 : vector<8x128xf32>
    %201 = arith.mulf %196, %200 : vector<8x128xf32>
    %202 = arith.index_cast %166 : i32 to index
    %c0_73 = arith.constant 0 : index
    %203 = vector.load %arg8[%202, %c0_73] : memref<64x128xf32, #tpu.memory_space<vmem>>, vector<8x128xf32>
    tpu.vector_store %arg8[%202, %c0_73], %201 {strides = array<i32>} : memref<64x128xf32, #tpu.memory_space<vmem>>, vector<8x128xf32>,
    %c5_i32 = arith.constant 5 : i32
    %c8_i32_74 = arith.constant 8 : i32
    %204 = arith.muli %c5_i32, %c8_i32_74 : i32
    %205 = tpu.assume_multiple %204, 8 : i32
    %206 = arith.index_cast %205 : i32 to index
    %c0_75 = arith.constant 0 : index
    %207 = vector.load %arg7[%206, %c0_75] : memref<64x512xf32, #tpu.memory_space<vmem>>, vector<8x512xf32>
    %cst_76 = arith.constant dense<0.000000e+00> : vector<8x512xf32>
    %208 = tpu.matmul %201, %7, %cst_76 {dimension_numbers = #tpu.dot_dimension_numbers<[1], [0], [0], [1], [0, 0, 1, 1], [], []>} : vector<8x128xf32>, vector<128x512xf32>, vector<8x512xf32> -> vector<8x512xf32>
    %209 = arith.addf %207, %208 : vector<8x512xf32>
    %210 = vector.extract_strided_slice %209 {offsets = [0, 0], sizes = [8, 128], strides = [1, 1]} : vector<8x512xf32> to vector<8x128xf32>
    %cst_77 = arith.constant 5.000000e-01 : f32
    %211 = vector.broadcast %cst_77 : f32 to vector<8x128xf32>
    %212 = arith.mulf %211, %210 : vector<8x128xf32>
    %213 = math.tanh %212 : vector<8x128xf32>
    %cst_78 = arith.constant 5.000000e-01 : f32
    %214 = vector.broadcast %cst_78 : f32 to vector<8x128xf32>
    %215 = arith.mulf %214, %213 : vector<8x128xf32>
    %cst_79 = arith.constant 5.000000e-01 : f32
    %216 = vector.broadcast %cst_79 : f32 to vector<8x128xf32>
    %217 = arith.addf %215, %216 : vector<8x128xf32>
    %218 = vector.extract_strided_slice %209 {offsets = [0, 128], sizes = [8, 128], strides = [1, 1]} : vector<8x512xf32> to vector<8x128xf32>
    %cst_80 = arith.constant 5.000000e-01 : f32
    %219 = vector.broadcast %cst_80 : f32 to vector<8x128xf32>
    %220 = arith.mulf %219, %218 : vector<8x128xf32>
    %221 = math.tanh %220 : vector<8x128xf32>
    %cst_81 = arith.constant 5.000000e-01 : f32
    %222 = vector.broadcast %cst_81 : f32 to vector<8x128xf32>
    %223 = arith.mulf %222, %221 : vector<8x128xf32>
    %cst_82 = arith.constant 5.000000e-01 : f32
    %224 = vector.broadcast %cst_82 : f32 to vector<8x128xf32>
    %225 = arith.addf %223, %224 : vector<8x128xf32>
    %226 = vector.extract_strided_slice %209 {offsets = [0, 256], sizes = [8, 128], strides = [1, 1]} : vector<8x512xf32> to vector<8x128xf32>
    %227 = math.tanh %226 : vector<8x128xf32>
    %228 = vector.extract_strided_slice %209 {offsets = [0, 384], sizes = [8, 128], strides = [1, 1]} : vector<8x512xf32> to vector<8x128xf32>
    %cst_83 = arith.constant 5.000000e-01 : f32
    %229 = vector.broadcast %cst_83 : f32 to vector<8x128xf32>
    %230 = arith.mulf %229, %228 : vector<8x128xf32>
    %231 = math.tanh %230 : vector<8x128xf32>
    %cst_84 = arith.constant 5.000000e-01 : f32
    %232 = vector.broadcast %cst_84 : f32 to vector<8x128xf32>
    %233 = arith.mulf %232, %231 : vector<8x128xf32>
    %cst_85 = arith.constant 5.000000e-01 : f32
    %234 = vector.broadcast %cst_85 : f32 to vector<8x128xf32>
    %235 = arith.addf %233, %234 : vector<8x128xf32>
    %236 = arith.mulf %225, %199 : vector<8x128xf32>
    %237 = arith.mulf %217, %227 : vector<8x128xf32>
    %238 = arith.addf %236, %237 : vector<8x128xf32>
    %239 = math.tanh %238 : vector<8x128xf32>
    %240 = arith.mulf %235, %239 : vector<8x128xf32>
    %241 = arith.index_cast %205 : i32 to index
    %c0_86 = arith.constant 0 : index
    %242 = vector.load %arg8[%241, %c0_86] : memref<64x128xf32, #tpu.memory_space<vmem>>, vector<8x128xf32>
    tpu.vector_store %arg8[%241, %c0_86], %240 {strides = array<i32>} : memref<64x128xf32, #tpu.memory_space<vmem>>, vector<8x128xf32>,
    %c6_i32 = arith.constant 6 : i32
    %c8_i32_87 = arith.constant 8 : i32
    %243 = arith.muli %c6_i32, %c8_i32_87 : i32
    %244 = tpu.assume_multiple %243, 8 : i32
    %245 = arith.index_cast %244 : i32 to index
    %c0_88 = arith.constant 0 : index
    %246 = vector.load %arg7[%245, %c0_88] : memref<64x512xf32, #tpu.memory_space<vmem>>, vector<8x512xf32>
    %cst_89 = arith.constant dense<0.000000e+00> : vector<8x512xf32>
    %247 = tpu.matmul %240, %7, %cst_89 {dimension_numbers = #tpu.dot_dimension_numbers<[1], [0], [0], [1], [0, 0, 1, 1], [], []>} : vector<8x128xf32>, vector<128x512xf32>, vector<8x512xf32> -> vector<8x512xf32>
    %248 = arith.addf %246, %247 : vector<8x512xf32>
    %249 = vector.extract_strided_slice %248 {offsets = [0, 0], sizes = [8, 128], strides = [1, 1]} : vector<8x512xf32> to vector<8x128xf32>
    %cst_90 = arith.constant 5.000000e-01 : f32
    %250 = vector.broadcast %cst_90 : f32 to vector<8x128xf32>
    %251 = arith.mulf %250, %249 : vector<8x128xf32>
    %252 = math.tanh %251 : vector<8x128xf32>
    %cst_91 = arith.constant 5.000000e-01 : f32
    %253 = vector.broadcast %cst_91 : f32 to vector<8x128xf32>
    %254 = arith.mulf %253, %252 : vector<8x128xf32>
    %cst_92 = arith.constant 5.000000e-01 : f32
    %255 = vector.broadcast %cst_92 : f32 to vector<8x128xf32>
    %256 = arith.addf %254, %255 : vector<8x128xf32>
    %257 = vector.extract_strided_slice %248 {offsets = [0, 128], sizes = [8, 128], strides = [1, 1]} : vector<8x512xf32> to vector<8x128xf32>
    %cst_93 = arith.constant 5.000000e-01 : f32
    %258 = vector.broadcast %cst_93 : f32 to vector<8x128xf32>
    %259 = arith.mulf %258, %257 : vector<8x128xf32>
    %260 = math.tanh %259 : vector<8x128xf32>
    %cst_94 = arith.constant 5.000000e-01 : f32
    %261 = vector.broadcast %cst_94 : f32 to vector<8x128xf32>
    %262 = arith.mulf %261, %260 : vector<8x128xf32>
    %cst_95 = arith.constant 5.000000e-01 : f32
    %263 = vector.broadcast %cst_95 : f32 to vector<8x128xf32>
    %264 = arith.addf %262, %263 : vector<8x128xf32>
    %265 = vector.extract_strided_slice %248 {offsets = [0, 256], sizes = [8, 128], strides = [1, 1]} : vector<8x512xf32> to vector<8x128xf32>
    %266 = math.tanh %265 : vector<8x128xf32>
    %267 = vector.extract_strided_slice %248 {offsets = [0, 384], sizes = [8, 128], strides = [1, 1]} : vector<8x512xf32> to vector<8x128xf32>
    %cst_96 = arith.constant 5.000000e-01 : f32
    %268 = vector.broadcast %cst_96 : f32 to vector<8x128xf32>
    %269 = arith.mulf %268, %267 : vector<8x128xf32>
    %270 = math.tanh %269 : vector<8x128xf32>
    %cst_97 = arith.constant 5.000000e-01 : f32
    %271 = vector.broadcast %cst_97 : f32 to vector<8x128xf32>
    %272 = arith.mulf %271, %270 : vector<8x128xf32>
    %cst_98 = arith.constant 5.000000e-01 : f32
    %273 = vector.broadcast %cst_98 : f32 to vector<8x128xf32>
    %274 = arith.addf %272, %273 : vector<8x128xf32>
    %275 = arith.mulf %264, %238 : vector<8x128xf32>
    %276 = arith.mulf %256, %266 : vector<8x128xf32>
    %277 = arith.addf %275, %276 : vector<8x128xf32>
    %278 = math.tanh %277 : vector<8x128xf32>
    %279 = arith.mulf %274, %278 : vector<8x128xf32>
    %280 = arith.index_cast %244 : i32 to index
    %c0_99 = arith.constant 0 : index
    %281 = vector.load %arg8[%280, %c0_99] : memref<64x128xf32, #tpu.memory_space<vmem>>, vector<8x128xf32>
    tpu.vector_store %arg8[%280, %c0_99], %279 {strides = array<i32>} : memref<64x128xf32, #tpu.memory_space<vmem>>, vector<8x128xf32>,
    %c7_i32 = arith.constant 7 : i32
    %c8_i32_100 = arith.constant 8 : i32
    %282 = arith.muli %c7_i32, %c8_i32_100 : i32
    %283 = tpu.assume_multiple %282, 8 : i32
    %284 = arith.index_cast %283 : i32 to index
    %c0_101 = arith.constant 0 : index
    %285 = vector.load %arg7[%284, %c0_101] : memref<64x512xf32, #tpu.memory_space<vmem>>, vector<8x512xf32>
    %cst_102 = arith.constant dense<0.000000e+00> : vector<8x512xf32>
    %286 = tpu.matmul %279, %7, %cst_102 {dimension_numbers = #tpu.dot_dimension_numbers<[1], [0], [0], [1], [0, 0, 1, 1], [], []>} : vector<8x128xf32>, vector<128x512xf32>, vector<8x512xf32> -> vector<8x512xf32>
    %287 = arith.addf %285, %286 : vector<8x512xf32>
    %288 = vector.extract_strided_slice %287 {offsets = [0, 0], sizes = [8, 128], strides = [1, 1]} : vector<8x512xf32> to vector<8x128xf32>
    %cst_103 = arith.constant 5.000000e-01 : f32
    %289 = vector.broadcast %cst_103 : f32 to vector<8x128xf32>
    %290 = arith.mulf %289, %288 : vector<8x128xf32>
    %291 = math.tanh %290 : vector<8x128xf32>
    %cst_104 = arith.constant 5.000000e-01 : f32
    %292 = vector.broadcast %cst_104 : f32 to vector<8x128xf32>
    %293 = arith.mulf %292, %291 : vector<8x128xf32>
    %cst_105 = arith.constant 5.000000e-01 : f32
    %294 = vector.broadcast %cst_105 : f32 to vector<8x128xf32>
    %295 = arith.addf %293, %294 : vector<8x128xf32>
    %296 = vector.extract_strided_slice %287 {offsets = [0, 128], sizes = [8, 128], strides = [1, 1]} : vector<8x512xf32> to vector<8x128xf32>
    %cst_106 = arith.constant 5.000000e-01 : f32
    %297 = vector.broadcast %cst_106 : f32 to vector<8x128xf32>
    %298 = arith.mulf %297, %296 : vector<8x128xf32>
    %299 = math.tanh %298 : vector<8x128xf32>
    %cst_107 = arith.constant 5.000000e-01 : f32
    %300 = vector.broadcast %cst_107 : f32 to vector<8x128xf32>
    %301 = arith.mulf %300, %299 : vector<8x128xf32>
    %cst_108 = arith.constant 5.000000e-01 : f32
    %302 = vector.broadcast %cst_108 : f32 to vector<8x128xf32>
    %303 = arith.addf %301, %302 : vector<8x128xf32>
    %304 = vector.extract_strided_slice %287 {offsets = [0, 256], sizes = [8, 128], strides = [1, 1]} : vector<8x512xf32> to vector<8x128xf32>
    %305 = math.tanh %304 : vector<8x128xf32>
    %306 = vector.extract_strided_slice %287 {offsets = [0, 384], sizes = [8, 128], strides = [1, 1]} : vector<8x512xf32> to vector<8x128xf32>
    %cst_109 = arith.constant 5.000000e-01 : f32
    %307 = vector.broadcast %cst_109 : f32 to vector<8x128xf32>
    %308 = arith.mulf %307, %306 : vector<8x128xf32>
    %309 = math.tanh %308 : vector<8x128xf32>
    %cst_110 = arith.constant 5.000000e-01 : f32
    %310 = vector.broadcast %cst_110 : f32 to vector<8x128xf32>
    %311 = arith.mulf %310, %309 : vector<8x128xf32>
    %cst_111 = arith.constant 5.000000e-01 : f32
    %312 = vector.broadcast %cst_111 : f32 to vector<8x128xf32>
    %313 = arith.addf %311, %312 : vector<8x128xf32>
    %314 = arith.mulf %303, %277 : vector<8x128xf32>
    %315 = arith.mulf %295, %305 : vector<8x128xf32>
    %316 = arith.addf %314, %315 : vector<8x128xf32>
    %317 = math.tanh %316 : vector<8x128xf32>
    %318 = arith.mulf %313, %317 : vector<8x128xf32>
    %319 = arith.index_cast %283 : i32 to index
    %c0_112 = arith.constant 0 : index
    %320 = vector.load %arg8[%319, %c0_112] : memref<64x128xf32, #tpu.memory_space<vmem>>, vector<8x128xf32>
    tpu.vector_store %arg8[%319, %c0_112], %318 {strides = array<i32>} : memref<64x128xf32, #tpu.memory_space<vmem>>, vector<8x128xf32>,
    %c8_i32_113 = arith.constant 8 : i32
    %c0_114 = arith.constant 0 : index
    %c0_115 = arith.constant 0 : index
    %321 = vector.load %arg8[%c0_114, %c0_115] : memref<64x128xf32, #tpu.memory_space<vmem>>, vector<64x128xf32>
    %c0_116 = arith.constant 0 : index
    %c0_117 = arith.constant 0 : index
    %322 = vector.load %arg4[%c0_116, %c0_117] : memref<128x1xf32, #tpu.memory_space<vmem>>, vector<128x1xf32>
    %cst_118 = arith.constant dense<0.000000e+00> : vector<64x1xf32>
    %323 = tpu.matmul %321, %322, %cst_118 {dimension_numbers = #tpu.dot_dimension_numbers<[1], [0], [0], [1], [0, 0, 1, 1], [], []>} : vector<64x128xf32>, vector<128x1xf32>, vector<64x1xf32> -> vector<64x1xf32>
    %c0_119 = arith.constant 0 : index
    %c0_120 = arith.constant 0 : index
    %324 = vector.load %arg5[%c0_119, %c0_120] : memref<1x1xf32, #tpu.memory_space<vmem>>, vector<1x1xf32>
    %325 = vector.broadcast %324 : vector<1x1xf32> to vector<64x1xf32>
    %326 = arith.addf %323, %325 : vector<64x1xf32>
    %c0_121 = arith.constant 0 : index
    %c0_122 = arith.constant 0 : index
    %327 = vector.load %arg6[%c0_121, %c0_122] : memref<64x1xf32, #tpu.memory_space<vmem>>, vector<64x1xf32>
    tpu.vector_store %arg6[%c0_121, %c0_122], %326 {strides = array<i32>} : memref<64x1xf32, #tpu.memory_space<vmem>>, vector<64x1xf32>,
    return
  }
}

</mosaic_0001>

<llo_original>
// kernel: lstm_reg_forward.1
$region0: #{lstm_reg_forward.1}
  #allocation0 [shape = 'u32[]', space=smem, size = 0x4, offset = 0x4, fixed_abs, tag = 'smem constant byte address 0x4 - core index']
  #allocation1 [shape = 'u32[144,128]{1,0:T(1,128)}', space=vmem, size = 0x12000, scoped, tag = 'internal scratch']
  #allocation2 [shape = 'f32[64,512]{1,0:T(8,128)}', space=vmem, size = 0x20000, scoped, tag = 'scratch operand']
  #allocation3 [shape = 'f32[64,128]{1,0:T(8,128)}', space=vmem, size = 0x8000, scoped, tag = 'scratch operand']
  #allocation4 [shape = 'f32[1,1]{1,0:T(1,128)S(1)}', space=vmem, size = 0x200, scoped, tag = 'scoped memory for lstm_reg_forward.1']
  %s0 = inlined_call_operand.vmem [shape: f32[64,4], index: 0, kind: input, shape index: {}]
  %s1 = inlined_call_operand.vmem [shape: f32[4,512], index: 1, kind: input, shape index: {}]
  %s2 = inlined_call_operand.vmem [shape: f32[128,512], index: 2, kind: input, shape index: {}]
  %s3 = inlined_call_operand.vmem [shape: f32[1,512], index: 3, kind: input, shape index: {}]
  %s4 = inlined_call_operand.vmem [shape: f32[128,1], index: 4, kind: input, shape index: {}]
  %s5 = inlined_call_operand.<no memory space> [shape: f32[1,1], index: 5, kind: input, shape index: {}]
  %s6 = inlined_call_operand.vmem [shape: f32[64,1], index: 6, kind: output, shape index: {}]
  %s7 = sld [smem:[#allocation0]]
  $region34: #{lstm_reg_forward.1} parent=0
    _
  %s9 = ssub.s32 1, %s7
  %s10 = scalar_select 0, %s9, %s7
  %v11 = vstv %s5
  %12 = vst [vmem:[#allocation4] sm:$0x1] %v11
  // Predicated region
  $region2: #{lstm_reg_forward.1} parent=0 // pred_check
    _
  $region3: #{lstm_reg_forward.1} parent=0 // pred_check_branch
    %14 = sbr.rel (0) target = $region5
  $region4: #{lstm_reg_forward.1} parent=0 // pred_region
    _
  $region5: #{lstm_reg_forward.1} parent=0 // pred_fallthru
    _
  // Predicated region
  $region6: #{lstm_reg_forward.1} parent=0 // pred_check
    _
  $region7: #{lstm_reg_forward.1} parent=0 // pred_check_branch
    %16 = sbr.rel (0) target = $region9
  $region8: #{lstm_reg_forward.1} parent=0 // pred_region
    _
  $region9: #{lstm_reg_forward.1} parent=0 // pred_fallthru
    _
  // Predicated region
  $region10: #{lstm_reg_forward.1} parent=0 // pred_check
    _
  $region11: #{lstm_reg_forward.1} parent=0 // pred_check_branch
    %18 = sbr.rel (0) target = $region13
  $region12: #{lstm_reg_forward.1} parent=0 // pred_region
    _
  $region13: #{lstm_reg_forward.1} parent=0 // pred_fallthru
    _
  // Predicated region
  $region14: #{lstm_reg_forward.1} parent=0 // pred_check
    _
  $region15: #{lstm_reg_forward.1} parent=0 // pred_check_branch
    %20 = sbr.rel (0) target = $region17
  $region16: #{lstm_reg_forward.1} parent=0 // pred_region
    _
  $region17: #{lstm_reg_forward.1} parent=0 // pred_fallthru
    _
  // Predicated region
  $region18: #{lstm_reg_forward.1} parent=0 // pred_check
    _
  $region19: #{lstm_reg_forward.1} parent=0 // pred_check_branch
    %22 = sbr.rel (0) target = $region21
  $region20: #{lstm_reg_forward.1} parent=0 // pred_region
    _
  $region21: #{lstm_reg_forward.1} parent=0 // pred_fallthru
    _
  // Predicated region
  $region22: #{lstm_reg_forward.1} parent=0 // pred_check
    _
  $region23: #{lstm_reg_forward.1} parent=0 // pred_check_branch
    %24 = sbr.rel (0) target = $region25
  $region24: #{lstm_reg_forward.1} parent=0 // pred_region
    _
  $region25: #{lstm_reg_forward.1} parent=0 // pred_fallthru
    _
  %v25 = vld [vmem:[%s0] sm:$0xff]
  %v26 = vld [vmem:[%s0 + $0x8] sm:$0xff]
  %v27 = vld [vmem:[%s0 + $0x10] sm:$0xff]
  %v28 = vld [vmem:[%s0 + $0x18] sm:$0xff]
  %v29 = vld [vmem:[%s0 + $0x20] sm:$0xff]
  %v30 = vld [vmem:[%s0 + $0x28] sm:$0xff]
  %v31 = vld [vmem:[%s0 + $0x30] sm:$0xff]
  %v32 = vld [vmem:[%s0 + $0x38] sm:$0xff]
  %v33 = vld [vmem:[%s1] sm:$0xff]
  %v34 = vld [vmem:[%s1 + $0x8] sm:$0xff]
  %v35 = vld [vmem:[%s3] sm:$0xf]
  %v37 = vlaneseq
  %v38 = vshrl.u32 %v37, 7
  %v39 = vsub.s32 0, %v38
  %v40 = vrot.slane %v35, %v39
  %v41 = vlaneseq
  %v42 = vshrl.u32 %v41, 7
  %v43 = vsub.s32 1, %v42
  %v44 = vrot.slane %v35, %v43
  %v45 = vlaneseq
  %v46 = vshrl.u32 %v45, 7
  %v47 = vsub.s32 2, %v46
  %v48 = vrot.slane %v35, %v47
  %v49 = vlaneseq
  %v50 = vshrl.u32 %v49, 7
  %v51 = vsub.s32 3, %v50
  %v52 = vrot.slane %v35, %v51
  %v59 = vcombine.high %v33, %v33
  %v60 = vcombine.high %v34, %v34
  %vm61 = vcmask 31744
  %v63 = vsel %vm61, %v25, 0
  %v66 = vsel %vm61, %v26, 0
  %v69 = vsel %vm61, %v27, 0
  %v72 = vsel %vm61, %v28, 0
  %v75 = vsel %vm61, %v29, 0
  %v78 = vsel %vm61, %v30, 0
  %v81 = vsel %vm61, %v31, 0
  %v84 = vsel %vm61, %v32, 0
  %vm86 = vcmask 1043456
  %v87 = vsel %vm86, %v33, 0
  %v89 = vsel %vm86, %v59, 0
  %v91 = vsel %vm86, %v34, 0
  %v93 = vsel %vm86, %v60, 0
  %95 = vmatprep.subr.mxu0 %v89
  %96 = vmatpush1.msra.mxu0 %v87
  %97 = vmatprep.subr.mxu0 0.0
  %98 = vmatpush1.msra.mxu0 0.0
  %99 = vmatprep.subr.mxu0 0.0
  %100 = vmatpush1.msra.mxu0 0.0
  %101 = vmatprep.subr.mxu0 0.0
  %102 = vmatpush1.msra.mxu0 0.0
  %103 = vmatprep.subr.mxu0 0.0
  %104 = vmatpush1.msra.mxu0 0.0
  %105 = vmatprep.subr.mxu0 0.0
  %106 = vmatpush1.msra.mxu0 0.0
  %107 = vmatprep.subr.mxu0 0.0
  %108 = vmatpush1.msra.mxu0 0.0
  %109 = vmatprep.subr.mxu0 0.0
  %110 = vmatpush1.msra.mxu0 0.0
  %111 = vmatprep.subr.mxu0 0.0
  %112 = vmatpush1.msra.mxu0 0.0
  %113 = vmatprep.subr.mxu0 0.0
  %114 = vmatpush1.msra.mxu0 0.0
  %115 = vmatprep.subr.mxu0 0.0
  %116 = vmatpush1.msra.mxu0 0.0
  %117 = vmatprep.subr.mxu0 0.0
  %118 = vmatpush1.msra.mxu0 0.0
  %119 = vmatprep.subr.mxu0 0.0
  %120 = vmatpush1.msra.mxu0 0.0
  %121 = vmatprep.subr.mxu0 0.0
  %122 = vmatpush1.msra.mxu0 0.0
  %123 = vmatprep.subr.mxu0 0.0
  %124 = vmatpush1.msra.mxu0 0.0
  %125 = vmatprep.subr.mxu0 0.0
  %126 = vmatpush1.msra.mxu0 0.0
  %127 = vmatprep.subr.mxu0 0.0
  %128 = vmatpush1.msra.mxu0 0.0
  %129 = vmatprep.subr.mxu0 0.0
  %130 = vmatpush1.msra.mxu0 0.0
  %131 = vmatprep.subr.mxu0 0.0
  %132 = vmatpush1.msra.mxu0 0.0
  %133 = vmatprep.subr.mxu0 0.0
  %134 = vmatpush1.msra.mxu0 0.0
  %135 = vmatprep.subr.mxu0 0.0
  %136 = vmatpush1.msra.mxu0 0.0
  %137 = vmatprep.subr.mxu0 0.0
  %138 = vmatpush1.msra.mxu0 0.0
  %139 = vmatprep.subr.mxu0 0.0
  %140 = vmatpush1.msra.mxu0 0.0
  %141 = vmatprep.subr.mxu0 0.0
  %142 = vmatpush1.msra.mxu0 0.0
  %143 = vmatprep.subr.mxu0 0.0
  %144 = vmatpush1.msra.mxu0 0.0
  %145 = vmatprep.subr.mxu0 0.0
  %146 = vmatpush1.msra.mxu0 0.0
  %147 = vmatprep.subr.mxu0 0.0
  %148 = vmatpush1.msra.mxu0 0.0
  %149 = vmatprep.subr.mxu0 0.0
  %150 = vmatpush1.msra.mxu0 0.0
  %151 = vmatprep.subr.mxu0 0.0
  %152 = vmatpush1.msra.mxu0 0.0
  %153 = vmatprep.subr.mxu0 0.0
  %154 = vmatpush1.msra.mxu0 0.0
  %155 = vmatprep.subr.mxu0 0.0
  %156 = vmatpush1.msra.mxu0 0.0
  %157 = vmatprep.subr.mxu0 0.0
  %158 = vmatpush1.msra.mxu0 0.0
  %159 = vmatprep.mubr.f32.mxu0 0.0
  %160 = vmatmul.mubr.f32.gmra.mrb[0].mxu0 %v63
  %v161 = vpop.f32.mrb[0].mxu0
  %v162 = vadd.f32 %v40, %v161
  %v163 = vpop.f32.mrb[0].mxu0
  %v164 = vadd.f32 %v44, %v163
  %165 = vmatprep.mubr.f32.mxu0 0.0
  %166 = vmatmul.mubr.f32.gmra.mrb[0].mxu0 %v66
  %v167 = vpop.f32.mrb[0].mxu0
  %v168 = vadd.f32 %v40, %v167
  %v169 = vpop.f32.mrb[0].mxu0
  %v170 = vadd.f32 %v44, %v169
  %171 = vmatprep.mubr.f32.mxu0 0.0
  %172 = vmatmul.mubr.f32.gmra.mrb[0].mxu0 %v69
  %v173 = vpop.f32.mrb[0].mxu0
  %v174 = vadd.f32 %v40, %v173
  %v175 = vpop.f32.mrb[0].mxu0
  %v176 = vadd.f32 %v44, %v175
  %177 = vmatprep.mubr.f32.mxu0 0.0
  %178 = vmatmul.mubr.f32.gmra.mrb[0].mxu0 %v72
  %v179 = vpop.f32.mrb[0].mxu0
  %v180 = vadd.f32 %v40, %v179
  %v181 = vpop.f32.mrb[0].mxu0
  %v182 = vadd.f32 %v44, %v181
  %183 = vmatprep.mubr.f32.mxu0 0.0
  %184 = vmatmul.mubr.f32.gmra.mrb[0].mxu0 %v75
  %v185 = vpop.f32.mrb[0].mxu0
  %v186 = vadd.f32 %v40, %v185
  %v187 = vpop.f32.mrb[0].mxu0
  %v188 = vadd.f32 %v44, %v187
  %189 = vmatprep.mubr.f32.mxu0 0.0
  %190 = vmatmul.mubr.f32.gmra.mrb[0].mxu0 %v78
  %v191 = vpop.f32.mrb[0].mxu0
  %v192 = vadd.f32 %v40, %v191
  %v193 = vpop.f32.mrb[0].mxu0
  %v194 = vadd.f32 %v44, %v193
  %195 = vmatprep.mubr.f32.mxu0 0.0
  %196 = vmatmul.mubr.f32.gmra.mrb[0].mxu0 %v81
  %v197 = vpop.f32.mrb[0].mxu0
  %v198 = vadd.f32 %v40, %v197
  %v199 = vpop.f32.mrb[0].mxu0
  %v200 = vadd.f32 %v44, %v199
  %201 = vmatprep.mubr.f32.mxu0 0.0
  %202 = vmatmul.mubr.f32.gmra.mrb[0].mxu0 %v84
  %v203 = vpop.f32.mrb[0].mxu0
  %v204 = vadd.f32 %v40, %v203
  %v205 = vpop.f32.mrb[0].mxu0
  %v206 = vadd.f32 %v44, %v205
  %207 = vdwg.mxu0
  %208 = vmatprep.subr.mxu0 %v93
  %209 = vmatpush1.msra.mxu0 %v91
  %210 = vmatprep.subr.mxu0 0.0
  %211 = vmatpush1.msra.mxu0 0.0
  %212 = vmatprep.subr.mxu0 0.0
  %213 = vmatpush1.msra.mxu0 0.0
  %214 = vmatprep.subr.mxu0 0.0
  %215 = vmatpush1.msra.mxu0 0.0
  %216 = vmatprep.subr.mxu0 0.0
  %217 = vmatpush1.msra.mxu0 0.0
  %218 = vmatprep.subr.mxu0 0.0
  %219 = vmatpush1.msra.mxu0 0.0
  %220 = vmatprep.subr.mxu0 0.0
  %221 = vmatpush1.msra.mxu0 0.0
  %222 = vmatprep.subr.mxu0 0.0
  %223 = vmatpush1.msra.mxu0 0.0
  %224 = vmatprep.subr.mxu0 0.0
  %225 = vmatpush1.msra.mxu0 0.0
  %226 = vmatprep.subr.mxu0 0.0
  %227 = vmatpush1.msra.mxu0 0.0
  %228 = vmatprep.subr.mxu0 0.0
  %229 = vmatpush1.msra.mxu0 0.0
  %230 = vmatprep.subr.mxu0 0.0
  %231 = vmatpush1.msra.mxu0 0.0
  %232 = vmatprep.subr.mxu0 0.0
  %233 = vmatpush1.msra.mxu0 0.0
  %234 = vmatprep.subr.mxu0 0.0
  %235 = vmatpush1.msra.mxu0 0.0
  %236 = vmatprep.subr.mxu0 0.0
  %237 = vmatpush1.msra.mxu0 0.0
  %238 = vmatprep.subr.mxu0 0.0
  %239 = vmatpush1.msra.mxu0 0.0
  %240 = vmatprep.subr.mxu0 0.0
  %241 = vmatpush1.msra.mxu0 0.0
  %242 = vmatprep.subr.mxu0 0.0
  %243 = vmatpush1.msra.mxu0 0.0
  %244 = vmatprep.subr.mxu0 0.0
  %245 = vmatpush1.msra.mxu0 0.0
  %246 = vmatprep.subr.mxu0 0.0
  %247 = vmatpush1.msra.mxu0 0.0
  %248 = vmatprep.subr.mxu0 0.0
  %249 = vmatpush1.msra.mxu0 0.0
  %250 = vmatprep.subr.mxu0 0.0
  %251 = vmatpush1.msra.mxu0 0.0
  %252 = vmatprep.subr.mxu0 0.0
  %253 = vmatpush1.msra.mxu0 0.0
  %254 = vmatprep.subr.mxu0 0.0
  %255 = vmatpush1.msra.mxu0 0.0
  %256 = vmatprep.subr.mxu0 0.0
  %257 = vmatpush1.msra.mxu0 0.0
  %258 = vmatprep.subr.mxu0 0.0
  %259 = vmatpush1.msra.mxu0 0.0
  %260 = vmatprep.subr.mxu0 0.0
  %261 = vmatpush1.msra.mxu0 0.0
  %262 = vmatprep.subr.mxu0 0.0
  %263 = vmatpush1.msra.mxu0 0.0
  %264 = vmatprep.subr.mxu0 0.0
  %265 = vmatpush1.msra.mxu0 0.0
  %266 = vmatprep.subr.mxu0 0.0
  %267 = vmatpush1.msra.mxu0 0.0
  %268 = vmatprep.subr.mxu0 0.0
  %269 = vmatpush1.msra.mxu0 0.0
  %270 = vmatprep.subr.mxu0 0.0
  %271 = vmatpush1.msra.mxu0 0.0
  %272 = vmatprep.mubr.f32.mxu0 0.0
  %273 = vmatmul.mubr.f32.gmra.mrb[0].mxu0 %v63
  %v274 = vpop.f32.mrb[0].mxu0
  %v275 = vadd.f32 %v48, %v274
  %v276 = vpop.f32.mrb[0].mxu0
  %v277 = vadd.f32 %v52, %v276
  %278 = vmatprep.mubr.f32.mxu0 0.0
  %279 = vmatmul.mubr.f32.gmra.mrb[0].mxu0 %v66
  %v280 = vpop.f32.mrb[0].mxu0
  %v281 = vadd.f32 %v48, %v280
  %v282 = vpop.f32.mrb[0].mxu0
  %v283 = vadd.f32 %v52, %v282
  %284 = vmatprep.mubr.f32.mxu0 0.0
  %285 = vmatmul.mubr.f32.gmra.mrb[0].mxu0 %v69
  %v286 = vpop.f32.mrb[0].mxu0
  %v287 = vadd.f32 %v48, %v286
  %v288 = vpop.f32.mrb[0].mxu0
  %v289 = vadd.f32 %v52, %v288
  %290 = vmatprep.mubr.f32.mxu0 0.0
  %291 = vmatmul.mubr.f32.gmra.mrb[0].mxu0 %v72
  %v292 = vpop.f32.mrb[0].mxu0
  %v293 = vadd.f32 %v48, %v292
  %v294 = vpop.f32.mrb[0].mxu0
  %v295 = vadd.f32 %v52, %v294
  %296 = vmatprep.mubr.f32.mxu0 0.0
  %297 = vmatmul.mubr.f32.gmra.mrb[0].mxu0 %v75
  %v298 = vpop.f32.mrb[0].mxu0
  %v299 = vadd.f32 %v48, %v298
  %v300 = vpop.f32.mrb[0].mxu0
  %v301 = vadd.f32 %v52, %v300
  %302 = vmatprep.mubr.f32.mxu0 0.0
  %303 = vmatmul.mubr.f32.gmra.mrb[0].mxu0 %v78
  %v304 = vpop.f32.mrb[0].mxu0
  %v305 = vadd.f32 %v48, %v304
  %v306 = vpop.f32.mrb[0].mxu0
  %v307 = vadd.f32 %v52, %v306
  %308 = vmatprep.mubr.f32.mxu0 0.0
  %309 = vmatmul.mubr.f32.gmra.mrb[0].mxu0 %v81
  %v310 = vpop.f32.mrb[0].mxu0
  %v311 = vadd.f32 %v48, %v310
  %v312 = vpop.f32.mrb[0].mxu0
  %v313 = vadd.f32 %v52, %v312
  %314 = vmatprep.mubr.f32.mxu0 0.0
  %315 = vmatmul.mubr.f32.gmra.mrb[0].mxu0 %v84
  %v316 = vpop.f32.mrb[0].mxu0
  %v317 = vadd.f32 %v48, %v316
  %v318 = vpop.f32.mrb[0].mxu0
  %v319 = vadd.f32 %v52, %v318
  %320 = vdwg.mxu0
  %321 = vst [vmem:[#allocation2] sm:$0xff] %v162
  %322 = vst [vmem:[#allocation2 + $0x8] sm:$0xff] %v164
  %323 = vst [vmem:[#allocation2 + $0x10] sm:$0xff] %v275
  %324 = vst [vmem:[#allocation2 + $0x18] sm:$0xff] %v277
  %325 = vst [vmem:[#allocation2 + $0x20] sm:$0xff] %v168
  %326 = vst [vmem:[#allocation2 + $0x28] sm:$0xff] %v170
  %327 = vst [vmem:[#allocation2 + $0x30] sm:$0xff] %v281
  %328 = vst [vmem:[#allocation2 + $0x38] sm:$0xff] %v283
  %329 = vst [vmem:[#allocation2 + $0x40] sm:$0xff] %v174
  %330 = vst [vmem:[#allocation2 + $0x48] sm:$0xff] %v176
  %331 = vst [vmem:[#allocation2 + $0x50] sm:$0xff] %v287
  %332 = vst [vmem:[#allocation2 + $0x58] sm:$0xff] %v289
  %333 = vst [vmem:[#allocation2 + $0x60] sm:$0xff] %v180
  %334 = vst [vmem:[#allocation2 + $0x68] sm:$0xff] %v182
  %335 = vst [vmem:[#allocation2 + $0x70] sm:$0xff] %v293
  %336 = vst [vmem:[#allocation2 + $0x78] sm:$0xff] %v295
  %337 = vst [vmem:[#allocation2 + $0x80] sm:$0xff] %v186
  %338 = vst [vmem:[#allocation2 + $0x88] sm:$0xff] %v188
  %339 = vst [vmem:[#allocation2 + $0x90] sm:$0xff] %v299
  %340 = vst [vmem:[#allocation2 + $0x98] sm:$0xff] %v301
  %341 = vst [vmem:[#allocation2 + $0xa0] sm:$0xff] %v192
  %342 = vst [vmem:[#allocation2 + $0xa8] sm:$0xff] %v194
  %343 = vst [vmem:[#allocation2 + $0xb0] sm:$0xff] %v305
  %344 = vst [vmem:[#allocation2 + $0xb8] sm:$0xff] %v307
  %345 = vst [vmem:[#allocation2 + $0xc0] sm:$0xff] %v198
  %346 = vst [vmem:[#allocation2 + $0xc8] sm:$0xff] %v200
  %347 = vst [vmem:[#allocation2 + $0xd0] sm:$0xff] %v311
  %348 = vst [vmem:[#allocation2 + $0xd8] sm:$0xff] %v313
  %349 = vst [vmem:[#allocation2 + $0xe0] sm:$0xff] %v204
  %350 = vst [vmem:[#allocation2 + $0xe8] sm:$0xff] %v206
  %351 = vst [vmem:[#allocation2 + $0xf0] sm:$0xff] %v317
  %352 = vst [vmem:[#allocation2 + $0xf8] sm:$0xff] %v319
  %v353 = vld [vmem:[%s2] sm:$0xff]
  %v354 = vld [vmem:[%s2 + $0x8] sm:$0xff]
  %v355 = vld [vmem:[%s2 + $0x10] sm:$0xff]
  %v356 = vld [vmem:[%s2 + $0x18] sm:$0xff]
  %v357 = vld [vmem:[%s2 + $0x20] sm:$0xff]
  %v358 = vld [vmem:[%s2 + $0x28] sm:$0xff]
  %v359 = vld [vmem:[%s2 + $0x30] sm:$0xff]
  %v360 = vld [vmem:[%s2 + $0x38] sm:$0xff]
  %v361 = vld [vmem:[%s2 + $0x40] sm:$0xff]
  %v362 = vld [vmem:[%s2 + $0x48] sm:$0xff]
  %v363 = vld [vmem:[%s2 + $0x50] sm:$0xff]
  %v364 = vld [vmem:[%s2 + $0x58] sm:$0xff]
  %v365 = vld [vmem:[%s2 + $0x60] sm:$0xff]
  %v366 = vld [vmem:[%s2 + $0x68] sm:$0xff]
  %v367 = vld [vmem:[%s2 + $0x70] sm:$0xff]
  %v368 = vld [vmem:[%s2 + $0x78] sm:$0xff]
  %v369 = vld [vmem:[%s2 + $0x80] sm:$0xff]
  %v370 = vld [vmem:[%s2 + $0x88] sm:$0xff]
  %v371 = vld [vmem:[%s2 + $0x90] sm:$0xff]
  %v372 = vld [vmem:[%s2 + $0x98] sm:$0xff]
  %v373 = vld [vmem:[%s2 + $0xa0] sm:$0xff]
  %v374 = vld [vmem:[%s2 + $0xa8] sm:$0xff]
  %v375 = vld [vmem:[%s2 + $0xb0] sm:$0xff]
  %v376 = vld [vmem:[%s2 + $0xb8] sm:$0xff]
  %v377 = vld [vmem:[%s2 + $0xc0] sm:$0xff]
  %v378 = vld [vmem:[%s2 + $0xc8] sm:$0xff]
  %v379 = vld [vmem:[%s2 + $0xd0] sm:$0xff]
  %v380 = vld [vmem:[%s2 + $0xd8] sm:$0xff]
  %v381 = vld [vmem:[%s2 + $0xe0] sm:$0xff]
  %v382 = vld [vmem:[%s2 + $0xe8] sm:$0xff]
  %v383 = vld [vmem:[%s2 + $0xf0] sm:$0xff]
  %v384 = vld [vmem:[%s2 + $0xf8] sm:$0xff]
  %v385 = vld [vmem:[%s2 + $0x100] sm:$0xff]
  %v386 = vld [vmem:[%s2 + $0x108] sm:$0xff]
  %v387 = vld [vmem:[%s2 + $0x110] sm:$0xff]
  %v388 = vld [vmem:[%s2 + $0x118] sm:$0xff]
  %v389 = vld [vmem:[%s2 + $0x120] sm:$0xff]
  %v390 = vld [vmem:[%s2 + $0x128] sm:$0xff]
  %v391 = vld [vmem:[%s2 + $0x130] sm:$0xff]
  %v392 = vld [vmem:[%s2 + $0x138] sm:$0xff]
  %v393 = vld [vmem:[%s2 + $0x140] sm:$0xff]
  %v394 = vld [vmem:[%s2 + $0x148] sm:$0xff]
  %v395 = vld [vmem:[%s2 + $0x150] sm:$0xff]
  %v396 = vld [vmem:[%s2 + $0x158] sm:$0xff]
  %v397 = vld [vmem:[%s2 + $0x160] sm:$0xff]
  %v398 = vld [vmem:[%s2 + $0x168] sm:$0xff]
  %v399 = vld [vmem:[%s2 + $0x170] sm:$0xff]
  %v400 = vld [vmem:[%s2 + $0x178] sm:$0xff]
  %v401 = vld [vmem:[%s2 + $0x180] sm:$0xff]
  %v402 = vld [vmem:[%s2 + $0x188] sm:$0xff]
  %v403 = vld [vmem:[%s2 + $0x190] sm:$0xff]
  %v404 = vld [vmem:[%s2 + $0x198] sm:$0xff]
  %v405 = vld [vmem:[%s2 + $0x1a0] sm:$0xff]
  %v406 = vld [vmem:[%s2 + $0x1a8] sm:$0xff]
  %v407 = vld [vmem:[%s2 + $0x1b0] sm:$0xff]
  %v408 = vld [vmem:[%s2 + $0x1b8] sm:$0xff]
  %v409 = vld [vmem:[%s2 + $0x1c0] sm:$0xff]
  %v410 = vld [vmem:[%s2 + $0x1c8] sm:$0xff]
  %v411 = vld [vmem:[%s2 + $0x1d0] sm:$0xff]
  %v412 = vld [vmem:[%s2 + $0x1d8] sm:$0xff]
  %v413 = vld [vmem:[%s2 + $0x1e0] sm:$0xff]
  %v414 = vld [vmem:[%s2 + $0x1e8] sm:$0xff]
  %v415 = vld [vmem:[%s2 + $0x1f0] sm:$0xff]
  %v416 = vld [vmem:[%s2 + $0x1f8] sm:$0xff]
  %s417 = smul.u32 0, 4
  %s418 = smul.addr %s417, 8
  %s419 = scalar_lea.vmem [#allocation2], %s418
  %v420 = vld [vmem:[%s419] sm:$0xff]
  %v421 = vld [vmem:[%s419 + $0x8] sm:$0xff]
  %v422 = vld [vmem:[%s419 + $0x10] sm:$0xff]
  %v423 = vld [vmem:[%s419 + $0x18] sm:$0xff]
  %424 = vmatprep.subr.mxu0 %v354
  %425 = vmatpush1.msra.mxu0 %v353
  %426 = vmatprep.subr.mxu0 %v358
  %427 = vmatpush1.msra.mxu0 %v357
  %428 = vmatprep.subr.mxu0 %v362
  %429 = vmatpush1.msra.mxu0 %v361
  %430 = vmatprep.subr.mxu0 %v366
  %431 = vmatpush1.msra.mxu0 %v365
  %432 = vmatprep.subr.mxu0 %v370
  %433 = vmatpush1.msra.mxu0 %v369
  %434 = vmatprep.subr.mxu0 %v374
  %435 = vmatpush1.msra.mxu0 %v373
  %436 = vmatprep.subr.mxu0 %v378
  %437 = vmatpush1.msra.mxu0 %v377
  %438 = vmatprep.subr.mxu0 %v382
  %439 = vmatpush1.msra.mxu0 %v381
  %440 = vmatprep.subr.mxu0 %v386
  %441 = vmatpush1.msra.mxu0 %v385
  %442 = vmatprep.subr.mxu0 %v390
  %443 = vmatpush1.msra.mxu0 %v389
  %444 = vmatprep.subr.mxu0 %v394
  %445 = vmatpush1.msra.mxu0 %v393
  %446 = vmatprep.subr.mxu0 %v398
  %447 = vmatpush1.msra.mxu0 %v397
  %448 = vmatprep.subr.mxu0 %v402
  %449 = vmatpush1.msra.mxu0 %v401
  %450 = vmatprep.subr.mxu0 %v406
  %451 = vmatpush1.msra.mxu0 %v405
  %452 = vmatprep.subr.mxu0 %v410
  %453 = vmatpush1.msra.mxu0 %v409
  %454 = vmatprep.subr.mxu0 %v414
  %455 = vmatpush1.msra.mxu0 %v413
  %456 = vmatprep.subr.mxu0 0.0
  %457 = vmatpush1.msra.mxu0 0.0
  %458 = vmatprep.subr.mxu0 0.0
  %459 = vmatpush1.msra.mxu0 0.0
  %460 = vmatprep.subr.mxu0 0.0
  %461 = vmatpush1.msra.mxu0 0.0
  %462 = vmatprep.subr.mxu0 0.0
  %463 = vmatpush1.msra.mxu0 0.0
  %464 = vmatprep.subr.mxu0 0.0
  %465 = vmatpush1.msra.mxu0 0.0
  %466 = vmatprep.subr.mxu0 0.0
  %467 = vmatpush1.msra.mxu0 0.0
  %468 = vmatprep.subr.mxu0 0.0
  %469 = vmatpush1.msra.mxu0 0.0
  %470 = vmatprep.subr.mxu0 0.0
  %471 = vmatpush1.msra.mxu0 0.0
  %472 = vmatprep.subr.mxu0 0.0
  %473 = vmatpush1.msra.mxu0 0.0
  %474 = vmatprep.subr.mxu0 0.0
  %475 = vmatpush1.msra.mxu0 0.0
  %476 = vmatprep.subr.mxu0 0.0
  %477 = vmatpush1.msra.mxu0 0.0
  %478 = vmatprep.subr.mxu0 0.0
  %479 = vmatpush1.msra.mxu0 0.0
  %480 = vmatprep.subr.mxu0 0.0
  %481 = vmatpush1.msra.mxu0 0.0
  %482 = vmatprep.subr.mxu0 0.0
  %483 = vmatpush1.msra.mxu0 0.0
  %484 = vmatprep.subr.mxu0 0.0
  %485 = vmatpush1.msra.mxu0 0.0
  %486 = vmatprep.subr.mxu0 0.0
  %487 = vmatpush1.msra.mxu0 0.0
  %488 = vmatprep.mubr.f32.mxu0 0.0
  %489 = vmatmul.mubr.f32.gmra.mrb[0].mxu0 0.0
  %v490 = vpop.f32.mrb[0].mxu0
  %v491 = vadd.f32 0.0, %v490
  %v492 = vpop.f32.mrb[0].mxu0
  %v493 = vadd.f32 0.0, %v492
  %494 = vdwg.mxu0
  %495 = vmatprep.subr.mxu0 %v356
  %496 = vmatpush1.msra.mxu0 %v355
  %497 = vmatprep.subr.mxu0 %v360
  %498 = vmatpush1.msra.mxu0 %v359
  %499 = vmatprep.subr.mxu0 %v364
  %500 = vmatpush1.msra.mxu0 %v363
  %501 = vmatprep.subr.mxu0 %v368
  %502 = vmatpush1.msra.mxu0 %v367
  %503 = vmatprep.subr.mxu0 %v372
  %504 = vmatpush1.msra.mxu0 %v371
  %505 = vmatprep.subr.mxu0 %v376
  %506 = vmatpush1.msra.mxu0 %v375
  %507 = vmatprep.subr.mxu0 %v380
  %508 = vmatpush1.msra.mxu0 %v379
  %509 = vmatprep.subr.mxu0 %v384
  %510 = vmatpush1.msra.mxu0 %v383
  %511 = vmatprep.subr.mxu0 %v388
  %512 = vmatpush1.msra.mxu0 %v387
  %513 = vmatprep.subr.mxu0 %v392
  %514 = vmatpush1.msra.mxu0 %v391
  %515 = vmatprep.subr.mxu0 %v396
  %516 = vmatpush1.msra.mxu0 %v395
  %517 = vmatprep.subr.mxu0 %v400
  %518 = vmatpush1.msra.mxu0 %v399
  %519 = vmatprep.subr.mxu0 %v404
  %520 = vmatpush1.msra.mxu0 %v403
  %521 = vmatprep.subr.mxu0 %v408
  %522 = vmatpush1.msra.mxu0 %v407
  %523 = vmatprep.subr.mxu0 %v412
  %524 = vmatpush1.msra.mxu0 %v411
  %525 = vmatprep.subr.mxu0 %v416
  %526 = vmatpush1.msra.mxu0 %v415
  %527 = vmatprep.subr.mxu0 0.0
  %528 = vmatpush1.msra.mxu0 0.0
  %529 = vmatprep.subr.mxu0 0.0
  %530 = vmatpush1.msra.mxu0 0.0
  %531 = vmatprep.subr.mxu0 0.0
  %532 = vmatpush1.msra.mxu0 0.0
  %533 = vmatprep.subr.mxu0 0.0
  %534 = vmatpush1.msra.mxu0 0.0
  %535 = vmatprep.subr.mxu0 0.0
  %536 = vmatpush1.msra.mxu0 0.0
  %537 = vmatprep.subr.mxu0 0.0
  %538 = vmatpush1.msra.mxu0 0.0
  %539 = vmatprep.subr.mxu0 0.0
  %540 = vmatpush1.msra.mxu0 0.0
  %541 = vmatprep.subr.mxu0 0.0
  %542 = vmatpush1.msra.mxu0 0.0
  %543 = vmatprep.subr.mxu0 0.0
  %544 = vmatpush1.msra.mxu0 0.0
  %545 = vmatprep.subr.mxu0 0.0
  %546 = vmatpush1.msra.mxu0 0.0
  %547 = vmatprep.subr.mxu0 0.0
  %548 = vmatpush1.msra.mxu0 0.0
  %549 = vmatprep.subr.mxu0 0.0
  %550 = vmatpush1.msra.mxu0 0.0
  %551 = vmatprep.subr.mxu0 0.0
  %552 = vmatpush1.msra.mxu0 0.0
  %553 = vmatprep.subr.mxu0 0.0
  %554 = vmatpush1.msra.mxu0 0.0
  %555 = vmatprep.subr.mxu0 0.0
  %556 = vmatpush1.msra.mxu0 0.0
  %557 = vmatprep.subr.mxu0 0.0
  %558 = vmatpush1.msra.mxu0 0.0
  %559 = vmatprep.mubr.f32.mxu0 0.0
  %560 = vmatmul.mubr.f32.gmra.mrb[0].mxu0 0.0
  %v561 = vpop.f32.mrb[0].mxu0
  %v562 = vadd.f32 0.0, %v561
  %v563 = vpop.f32.mrb[0].mxu0
  %v564 = vadd.f32 0.0, %v563
  %565 = vdwg.mxu0
  %v566 = vadd.f32 %v420, %v491
  %v567 = vadd.f32 %v421, %v493
  %v568 = vadd.f32 %v422, %v562
  %v569 = vadd.f32 %v423, %v564
  %v570 = vmul.f32 %v566, 0.5
  %v571 = vtanh.pop %v570
  %v572 = vmul.f32 %v571, 0.5
  %v573 = vadd.f32 %v572, 0.5
  %v574 = vmul.f32 %v567, 0.5
  %v575 = vtanh.pop %v574
  %v576 = vmul.f32 %v575, 0.5
  %v577 = vadd.f32 %v576, 0.5
  %v578 = vtanh.pop %v568
  %v579 = vmul.f32 %v569, 0.5
  %v580 = vtanh.pop %v579
  %v581 = vmul.f32 %v580, 0.5
  %v582 = vadd.f32 %v581, 0.5
  %v583 = vmul.f32 %v577, 0.0
  %v584 = vmul.f32 %v573, %v578
  %v585 = vadd.f32 %v583, %v584
  %v586 = vtanh.pop %v585
  %v587 = vmul.f32 %v582, %v586
  %588 = vst [vmem:[#allocation3] sm:$0xff] %v587
  %s589 = smul.u32 1, 4
  %s590 = smul.addr %s589, 8
  %s591 = scalar_lea.vmem [#allocation2], %s590
  %v592 = vld [vmem:[%s591] sm:$0xff]
  %v593 = vld [vmem:[%s591 + $0x8] sm:$0xff]
  %v594 = vld [vmem:[%s591 + $0x10] sm:$0xff]
  %v595 = vld [vmem:[%s591 + $0x18] sm:$0xff]
  %596 = vmatprep.subr.mxu0 %v354
  %597 = vmatpush1.msra.mxu0 %v353
  %598 = vmatprep.subr.mxu0 %v358
  %599 = vmatpush1.msra.mxu0 %v357
  %600 = vmatprep.subr.mxu0 %v362
  %601 = vmatpush1.msra.mxu0 %v361
  %602 = vmatprep.subr.mxu0 %v366
  %603 = vmatpush1.msra.mxu0 %v365
  %604 = vmatprep.subr.mxu0 %v370
  %605 = vmatpush1.msra.mxu0 %v369
  %606 = vmatprep.subr.mxu0 %v374
  %607 = vmatpush1.msra.mxu0 %v373
  %608 = vmatprep.subr.mxu0 %v378
  %609 = vmatpush1.msra.mxu0 %v377
  %610 = vmatprep.subr.mxu0 %v382
  %611 = vmatpush1.msra.mxu0 %v381
  %612 = vmatprep.subr.mxu0 %v386
  %613 = vmatpush1.msra.mxu0 %v385
  %614 = vmatprep.subr.mxu0 %v390
  %615 = vmatpush1.msra.mxu0 %v389
  %616 = vmatprep.subr.mxu0 %v394
  %617 = vmatpush1.msra.mxu0 %v393
  %618 = vmatprep.subr.mxu0 %v398
  %619 = vmatpush1.msra.mxu0 %v397
  %620 = vmatprep.subr.mxu0 %v402
  %621 = vmatpush1.msra.mxu0 %v401
  %622 = vmatprep.subr.mxu0 %v406
  %623 = vmatpush1.msra.mxu0 %v405
  %624 = vmatprep.subr.mxu0 %v410
  %625 = vmatpush1.msra.mxu0 %v409
  %626 = vmatprep.subr.mxu0 %v414
  %627 = vmatpush1.msra.mxu0 %v413
  %628 = vmatprep.subr.mxu0 0.0
  %629 = vmatpush1.msra.mxu0 0.0
  %630 = vmatprep.subr.mxu0 0.0
  %631 = vmatpush1.msra.mxu0 0.0
  %632 = vmatprep.subr.mxu0 0.0
  %633 = vmatpush1.msra.mxu0 0.0
  %634 = vmatprep.subr.mxu0 0.0
  %635 = vmatpush1.msra.mxu0 0.0
  %636 = vmatprep.subr.mxu0 0.0
  %637 = vmatpush1.msra.mxu0 0.0
  %638 = vmatprep.subr.mxu0 0.0
  %639 = vmatpush1.msra.mxu0 0.0
  %640 = vmatprep.subr.mxu0 0.0
  %641 = vmatpush1.msra.mxu0 0.0
  %642 = vmatprep.subr.mxu0 0.0
  %643 = vmatpush1.msra.mxu0 0.0
  %644 = vmatprep.subr.mxu0 0.0
  %645 = vmatpush1.msra.mxu0 0.0
  %646 = vmatprep.subr.mxu0 0.0
  %647 = vmatpush1.msra.mxu0 0.0
  %648 = vmatprep.subr.mxu0 0.0
  %649 = vmatpush1.msra.mxu0 0.0
  %650 = vmatprep.subr.mxu0 0.0
  %651 = vmatpush1.msra.mxu0 0.0
  %652 = vmatprep.subr.mxu0 0.0
  %653 = vmatpush1.msra.mxu0 0.0
  %654 = vmatprep.subr.mxu0 0.0
  %655 = vmatpush1.msra.mxu0 0.0
  %656 = vmatprep.subr.mxu0 0.0
  %657 = vmatpush1.msra.mxu0 0.0
  %658 = vmatprep.subr.mxu0 0.0
  %659 = vmatpush1.msra.mxu0 0.0
  %660 = vmatprep.mubr.f32.mxu0 0.0
  %661 = vmatmul.mubr.f32.gmra.mrb[0].mxu0 %v587
  %v662 = vpop.f32.mrb[0].mxu0
  %v663 = vadd.f32 0.0, %v662
  %v664 = vpop.f32.mrb[0].mxu0
  %v665 = vadd.f32 0.0, %v664
  %666 = vdwg.mxu0
  %667 = vmatprep.subr.mxu0 %v356
  %668 = vmatpush1.msra.mxu0 %v355
  %669 = vmatprep.subr.mxu0 %v360
  %670 = vmatpush1.msra.mxu0 %v359
  %671 = vmatprep.subr.mxu0 %v364
  %672 = vmatpush1.msra.mxu0 %v363
  %673 = vmatprep.subr.mxu0 %v368
  %674 = vmatpush1.msra.mxu0 %v367
  %675 = vmatprep.subr.mxu0 %v372
  %676 = vmatpush1.msra.mxu0 %v371
  %677 = vmatprep.subr.mxu0 %v376
  %678 = vmatpush1.msra.mxu0 %v375
  %679 = vmatprep.subr.mxu0 %v380
  %680 = vmatpush1.msra.mxu0 %v379
  %681 = vmatprep.subr.mxu0 %v384
  %682 = vmatpush1.msra.mxu0 %v383
  %683 = vmatprep.subr.mxu0 %v388
  %684 = vmatpush1.msra.mxu0 %v387
  %685 = vmatprep.subr.mxu0 %v392
  %686 = vmatpush1.msra.mxu0 %v391
  %687 = vmatprep.subr.mxu0 %v396
  %688 = vmatpush1.msra.mxu0 %v395
  %689 = vmatprep.subr.mxu0 %v400
  %690 = vmatpush1.msra.mxu0 %v399
  %691 = vmatprep.subr.mxu0 %v404
  %692 = vmatpush1.msra.mxu0 %v403
  %693 = vmatprep.subr.mxu0 %v408
  %694 = vmatpush1.msra.mxu0 %v407
  %695 = vmatprep.subr.mxu0 %v412
  %696 = vmatpush1.msra.mxu0 %v411
  %697 = vmatprep.subr.mxu0 %v416
  %698 = vmatpush1.msra.mxu0 %v415
  %699 = vmatprep.subr.mxu0 0.0
  %700 = vmatpush1.msra.mxu0 0.0
  %701 = vmatprep.subr.mxu0 0.0
  %702 = vmatpush1.msra.mxu0 0.0
  %703 = vmatprep.subr.mxu0 0.0
  %704 = vmatpush1.msra.mxu0 0.0
  %705 = vmatprep.subr.mxu0 0.0
  %706 = vmatpush1.msra.mxu0 0.0
  %707 = vmatprep.subr.mxu0 0.0
  %708 = vmatpush1.msra.mxu0 0.0
  %709 = vmatprep.subr.mxu0 0.0
  %710 = vmatpush1.msra.mxu0 0.0
  %711 = vmatprep.subr.mxu0 0.0
  %712 = vmatpush1.msra.mxu0 0.0
  %713 = vmatprep.subr.mxu0 0.0
  %714 = vmatpush1.msra.mxu0 0.0
  %715 = vmatprep.subr.mxu0 0.0
  %716 = vmatpush1.msra.mxu0 0.0
  %717 = vmatprep.subr.mxu0 0.0
  %718 = vmatpush1.msra.mxu0 0.0
  %719 = vmatprep.subr.mxu0 0.0
  %720 = vmatpush1.msra.mxu0 0.0
  %721 = vmatprep.subr.mxu0 0.0
  %722 = vmatpush1.msra.mxu0 0.0
  %723 = vmatprep.subr.mxu0 0.0
  %724 = vmatpush1.msra.mxu0 0.0
  %725 = vmatprep.subr.mxu0 0.0
  %726 = vmatpush1.msra.mxu0 0.0
  %727 = vmatprep.subr.mxu0 0.0
  %728 = vmatpush1.msra.mxu0 0.0
  %729 = vmatprep.subr.mxu0 0.0
  %730 = vmatpush1.msra.mxu0 0.0
  %731 = vmatprep.mubr.f32.mxu0 0.0
  %732 = vmatmul.mubr.f32.gmra.mrb[0].mxu0 %v587
  %v733 = vpop.f32.mrb[0].mxu0
  %v734 = vadd.f32 0.0, %v733
  %v735 = vpop.f32.mrb[0].mxu0
  %v736 = vadd.f32 0.0, %v735
  %737 = vdwg.mxu0
  %v738 = vadd.f32 %v592, %v663
  %v739 = vadd.f32 %v593, %v665
  %v740 = vadd.f32 %v594, %v734
  %v741 = vadd.f32 %v595, %v736
  %v742 = vmul.f32 %v738, 0.5
  %v743 = vtanh.pop %v742
  %v744 = vmul.f32 %v743, 0.5
  %v745 = vadd.f32 %v744, 0.5
  %v746 = vmul.f32 %v739, 0.5
  %v747 = vtanh.pop %v746
  %v748 = vmul.f32 %v747, 0.5
  %v749 = vadd.f32 %v748, 0.5
  %v750 = vtanh.pop %v740
  %v751 = vmul.f32 %v741, 0.5
  %v752 = vtanh.pop %v751
  %v753 = vmul.f32 %v752, 0.5
  %v754 = vadd.f32 %v753, 0.5
  %v755 = vmul.f32 %v749, %v585
  %v756 = vmul.f32 %v745, %v750
  %v757 = vadd.f32 %v755, %v756
  %v758 = vtanh.pop %v757
  %v759 = vmul.f32 %v754, %v758
  %s760 = scalar_lea.vmem [#allocation3], 8
  %761 = vst [vmem:[%s760] sm:$0xff] %v759
  %s762 = smul.u32 2, 4
  %s763 = smul.addr %s762, 8
  %s764 = scalar_lea.vmem [#allocation2], %s763
  %v765 = vld [vmem:[%s764] sm:$0xff]
  %v766 = vld [vmem:[%s764 + $0x8] sm:$0xff]
  %v767 = vld [vmem:[%s764 + $0x10] sm:$0xff]
  %v768 = vld [vmem:[%s764 + $0x18] sm:$0xff]
  %769 = vmatprep.subr.mxu0 %v354
  %770 = vmatpush1.msra.mxu0 %v353
  %771 = vmatprep.subr.mxu0 %v358
  %772 = vmatpush1.msra.mxu0 %v357
  %773 = vmatprep.subr.mxu0 %v362
  %774 = vmatpush1.msra.mxu0 %v361
  %775 = vmatprep.subr.mxu0 %v366
  %776 = vmatpush1.msra.mxu0 %v365
  %777 = vmatprep.subr.mxu0 %v370
  %778 = vmatpush1.msra.mxu0 %v369
  %779 = vmatprep.subr.mxu0 %v374
  %780 = vmatpush1.msra.mxu0 %v373
  %781 = vmatprep.subr.mxu0 %v378
  %782 = vmatpush1.msra.mxu0 %v377
  %783 = vmatprep.subr.mxu0 %v382
  %784 = vmatpush1.msra.mxu0 %v381
  %785 = vmatprep.subr.mxu0 %v386
  %786 = vmatpush1.msra.mxu0 %v385
  %787 = vmatprep.subr.mxu0 %v390
  %788 = vmatpush1.msra.mxu0 %v389
  %789 = vmatprep.subr.mxu0 %v394
  %790 = vmatpush1.msra.mxu0 %v393
  %791 = vmatprep.subr.mxu0 %v398
  %792 = vmatpush1.msra.mxu0 %v397
  %793 = vmatprep.subr.mxu0 %v402
  %794 = vmatpush1.msra.mxu0 %v401
  %795 = vmatprep.subr.mxu0 %v406
  %796 = vmatpush1.msra.mxu0 %v405
  %797 = vmatprep.subr.mxu0 %v410
  %798 = vmatpush1.msra.mxu0 %v409
  %799 = vmatprep.subr.mxu0 %v414
  %800 = vmatpush1.msra.mxu0 %v413
  %801 = vmatprep.subr.mxu0 0.0
  %802 = vmatpush1.msra.mxu0 0.0
  %803 = vmatprep.subr.mxu0 0.0
  %804 = vmatpush1.msra.mxu0 0.0
  %805 = vmatprep.subr.mxu0 0.0
  %806 = vmatpush1.msra.mxu0 0.0
  %807 = vmatprep.subr.mxu0 0.0
  %808 = vmatpush1.msra.mxu0 0.0
  %809 = vmatprep.subr.mxu0 0.0
  %810 = vmatpush1.msra.mxu0 0.0
  %811 = vmatprep.subr.mxu0 0.0
  %812 = vmatpush1.msra.mxu0 0.0
  %813 = vmatprep.subr.mxu0 0.0
  %814 = vmatpush1.msra.mxu0 0.0
  %815 = vmatprep.subr.mxu0 0.0
  %816 = vmatpush1.msra.mxu0 0.0
  %817 = vmatprep.subr.mxu0 0.0
  %818 = vmatpush1.msra.mxu0 0.0
  %819 = vmatprep.subr.mxu0 0.0
  %820 = vmatpush1.msra.mxu0 0.0
  %821 = vmatprep.subr.mxu0 0.0
  %822 = vmatpush1.msra.mxu0 0.0
  %823 = vmatprep.subr.mxu0 0.0
  %824 = vmatpush1.msra.mxu0 0.0
  %825 = vmatprep.subr.mxu0 0.0
  %826 = vmatpush1.msra.mxu0 0.0
  %827 = vmatprep.subr.mxu0 0.0
  %828 = vmatpush1.msra.mxu0 0.0
  %829 = vmatprep.subr.mxu0 0.0
  %830 = vmatpush1.msra.mxu0 0.0
  %831 = vmatprep.subr.mxu0 0.0
  %832 = vmatpush1.msra.mxu0 0.0
  %833 = vmatprep.mubr.f32.mxu0 0.0
  %834 = vmatmul.mubr.f32.gmra.mrb[0].mxu0 %v759
  %v835 = vpop.f32.mrb[0].mxu0
  %v836 = vadd.f32 0.0, %v835
  %v837 = vpop.f32.mrb[0].mxu0
  %v838 = vadd.f32 0.0, %v837
  %839 = vdwg.mxu0
  %840 = vmatprep.subr.mxu0 %v356
  %841 = vmatpush1.msra.mxu0 %v355
  %842 = vmatprep.subr.mxu0 %v360
  %843 = vmatpush1.msra.mxu0 %v359
  %844 = vmatprep.subr.mxu0 %v364
  %845 = vmatpush1.msra.mxu0 %v363
  %846 = vmatprep.subr.mxu0 %v368
  %847 = vmatpush1.msra.mxu0 %v367
  %848 = vmatprep.subr.mxu0 %v372
  %849 = vmatpush1.msra.mxu0 %v371
  %850 = vmatprep.subr.mxu0 %v376
  %851 = vmatpush1.msra.mxu0 %v375
  %852 = vmatprep.subr.mxu0 %v380
  %853 = vmatpush1.msra.mxu0 %v379
  %854 = vmatprep.subr.mxu0 %v384
  %855 = vmatpush1.msra.mxu0 %v383
  %856 = vmatprep.subr.mxu0 %v388
  %857 = vmatpush1.msra.mxu0 %v387
  %858 = vmatprep.subr.mxu0 %v392
  %859 = vmatpush1.msra.mxu0 %v391
  %860 = vmatprep.subr.mxu0 %v396
  %861 = vmatpush1.msra.mxu0 %v395
  %862 = vmatprep.subr.mxu0 %v400
  %863 = vmatpush1.msra.mxu0 %v399
  %864 = vmatprep.subr.mxu0 %v404
  %865 = vmatpush1.msra.mxu0 %v403
  %866 = vmatprep.subr.mxu0 %v408
  %867 = vmatpush1.msra.mxu0 %v407
  %868 = vmatprep.subr.mxu0 %v412
  %869 = vmatpush1.msra.mxu0 %v411
  %870 = vmatprep.subr.mxu0 %v416
  %871 = vmatpush1.msra.mxu0 %v415
  %872 = vmatprep.subr.mxu0 0.0
  %873 = vmatpush1.msra.mxu0 0.0
  %874 = vmatprep.subr.mxu0 0.0
  %875 = vmatpush1.msra.mxu0 0.0
  %876 = vmatprep.subr.mxu0 0.0
  %877 = vmatpush1.msra.mxu0 0.0
  %878 = vmatprep.subr.mxu0 0.0
  %879 = vmatpush1.msra.mxu0 0.0
  %880 = vmatprep.subr.mxu0 0.0
  %881 = vmatpush1.msra.mxu0 0.0
  %882 = vmatprep.subr.mxu0 0.0
  %883 = vmatpush1.msra.mxu0 0.0
  %884 = vmatprep.subr.mxu0 0.0
  %885 = vmatpush1.msra.mxu0 0.0
  %886 = vmatprep.subr.mxu0 0.0
  %887 = vmatpush1.msra.mxu0 0.0
  %888 = vmatprep.subr.mxu0 0.0
  %889 = vmatpush1.msra.mxu0 0.0
  %890 = vmatprep.subr.mxu0 0.0
  %891 = vmatpush1.msra.mxu0 0.0
  %892 = vmatprep.subr.mxu0 0.0
  %893 = vmatpush1.msra.mxu0 0.0
  %894 = vmatprep.subr.mxu0 0.0
  %895 = vmatpush1.msra.mxu0 0.0
  %896 = vmatprep.subr.mxu0 0.0
  %897 = vmatpush1.msra.mxu0 0.0
  %898 = vmatprep.subr.mxu0 0.0
  %899 = vmatpush1.msra.mxu0 0.0
  %900 = vmatprep.subr.mxu0 0.0
  %901 = vmatpush1.msra.mxu0 0.0
  %902 = vmatprep.subr.mxu0 0.0
  %903 = vmatpush1.msra.mxu0 0.0
  %904 = vmatprep.mubr.f32.mxu0 0.0
  %905 = vmatmul.mubr.f32.gmra.mrb[0].mxu0 %v759
  %v906 = vpop.f32.mrb[0].mxu0
  %v907 = vadd.f32 0.0, %v906
  %v908 = vpop.f32.mrb[0].mxu0
  %v909 = vadd.f32 0.0, %v908
  %910 = vdwg.mxu0
  %v911 = vadd.f32 %v765, %v836
  %v912 = vadd.f32 %v766, %v838
  %v913 = vadd.f32 %v767, %v907
  %v914 = vadd.f32 %v768, %v909
  %v915 = vmul.f32 %v911, 0.5
  %v916 = vtanh.pop %v915
  %v917 = vmul.f32 %v916, 0.5
  %v918 = vadd.f32 %v917, 0.5
  %v919 = vmul.f32 %v912, 0.5
  %v920 = vtanh.pop %v919
  %v921 = vmul.f32 %v920, 0.5
  %v922 = vadd.f32 %v921, 0.5
  %v923 = vtanh.pop %v913
  %v924 = vmul.f32 %v914, 0.5
  %v925 = vtanh.pop %v924
  %v926 = vmul.f32 %v925, 0.5
  %v927 = vadd.f32 %v926, 0.5
  %v928 = vmul.f32 %v922, %v757
  %v929 = vmul.f32 %v918, %v923
  %v930 = vadd.f32 %v928, %v929
  %v931 = vtanh.pop %v930
  %v932 = vmul.f32 %v927, %v931
  %s933 = scalar_lea.vmem [#allocation3], 16
  %934 = vst [vmem:[%s933] sm:$0xff] %v932
  %s935 = smul.u32 3, 4
  %s936 = smul.addr %s935, 8
  %s937 = scalar_lea.vmem [#allocation2], %s936
  %v938 = vld [vmem:[%s937] sm:$0xff]
  %v939 = vld [vmem:[%s937 + $0x8] sm:$0xff]
  %v940 = vld [vmem:[%s937 + $0x10] sm:$0xff]
  %v941 = vld [vmem:[%s937 + $0x18] sm:$0xff]
  %942 = vmatprep.subr.mxu0 %v354
  %943 = vmatpush1.msra.mxu0 %v353
  %944 = vmatprep.subr.mxu0 %v358
  %945 = vmatpush1.msra.mxu0 %v357
  %946 = vmatprep.subr.mxu0 %v362
  %947 = vmatpush1.msra.mxu0 %v361
  %948 = vmatprep.subr.mxu0 %v366
  %949 = vmatpush1.msra.mxu0 %v365
  %950 = vmatprep.subr.mxu0 %v370
  %951 = vmatpush1.msra.mxu0 %v369
  %952 = vmatprep.subr.mxu0 %v374
  %953 = vmatpush1.msra.mxu0 %v373
  %954 = vmatprep.subr.mxu0 %v378
  %955 = vmatpush1.msra.mxu0 %v377
  %956 = vmatprep.subr.mxu0 %v382
  %957 = vmatpush1.msra.mxu0 %v381
  %958 = vmatprep.subr.mxu0 %v386
  %959 = vmatpush1.msra.mxu0 %v385
  %960 = vmatprep.subr.mxu0 %v390
  %961 = vmatpush1.msra.mxu0 %v389
  %962 = vmatprep.subr.mxu0 %v394
  %963 = vmatpush1.msra.mxu0 %v393
  %964 = vmatprep.subr.mxu0 %v398
  %965 = vmatpush1.msra.mxu0 %v397
  %966 = vmatprep.subr.mxu0 %v402
  %967 = vmatpush1.msra.mxu0 %v401
  %968 = vmatprep.subr.mxu0 %v406
  %969 = vmatpush1.msra.mxu0 %v405
  %970 = vmatprep.subr.mxu0 %v410
  %971 = vmatpush1.msra.mxu0 %v409
  %972 = vmatprep.subr.mxu0 %v414
  %973 = vmatpush1.msra.mxu0 %v413
  %974 = vmatprep.subr.mxu0 0.0
  %975 = vmatpush1.msra.mxu0 0.0
  %976 = vmatprep.subr.mxu0 0.0
  %977 = vmatpush1.msra.mxu0 0.0
  %978 = vmatprep.subr.mxu0 0.0
  %979 = vmatpush1.msra.mxu0 0.0
  %980 = vmatprep.subr.mxu0 0.0
  %981 = vmatpush1.msra.mxu0 0.0
  %982 = vmatprep.subr.mxu0 0.0
  %983 = vmatpush1.msra.mxu0 0.0
  %984 = vmatprep.subr.mxu0 0.0
  %985 = vmatpush1.msra.mxu0 0.0
  %986 = vmatprep.subr.mxu0 0.0
  %987 = vmatpush1.msra.mxu0 0.0
  %988 = vmatprep.subr.mxu0 0.0
  %989 = vmatpush1.msra.mxu0 0.0
  %990 = vmatprep.subr.mxu0 0.0
  %991 = vmatpush1.msra.mxu0 0.0
  %992 = vmatprep.subr.mxu0 0.0
  %993 = vmatpush1.msra.mxu0 0.0
  %994 = vmatprep.subr.mxu0 0.0
  %995 = vmatpush1.msra.mxu0 0.0
  %996 = vmatprep.subr.mxu0 0.0
  %997 = vmatpush1.msra.mxu0 0.0
  %998 = vmatprep.subr.mxu0 0.0
  %999 = vmatpush1.msra.mxu0 0.0
  %1000 = vmatprep.subr.mxu0 0.0
  %1001 = vmatpush1.msra.mxu0 0.0
  %1002 = vmatprep.subr.mxu0 0.0
  %1003 = vmatpush1.msra.mxu0 0.0
  %1004 = vmatprep.subr.mxu0 0.0
  %1005 = vmatpush1.msra.mxu0 0.0
  %1006 = vmatprep.mubr.f32.mxu0 0.0
  %1007 = vmatmul.mubr.f32.gmra.mrb[0].mxu0 %v932
  %v1008 = vpop.f32.mrb[0].mxu0
  %v1009 = vadd.f32 0.0, %v1008
  %v1010 = vpop.f32.mrb[0].mxu0
  %v1011 = vadd.f32 0.0, %v1010
  %1012 = vdwg.mxu0
  %1013 = vmatprep.subr.mxu0 %v356
  %1014 = vmatpush1.msra.mxu0 %v355
  %1015 = vmatprep.subr.mxu0 %v360
  %1016 = vmatpush1.msra.mxu0 %v359
  %1017 = vmatprep.subr.mxu0 %v364
  %1018 = vmatpush1.msra.mxu0 %v363
  %1019 = vmatprep.subr.mxu0 %v368
  %1020 = vmatpush1.msra.mxu0 %v367
  %1021 = vmatprep.subr.mxu0 %v372
  %1022 = vmatpush1.msra.mxu0 %v371
  %1023 = vmatprep.subr.mxu0 %v376
  %1024 = vmatpush1.msra.mxu0 %v375
  %1025 = vmatprep.subr.mxu0 %v380
  %1026 = vmatpush1.msra.mxu0 %v379
  %1027 = vmatprep.subr.mxu0 %v384
  %1028 = vmatpush1.msra.mxu0 %v383
  %1029 = vmatprep.subr.mxu0 %v388
  %1030 = vmatpush1.msra.mxu0 %v387
  %1031 = vmatprep.subr.mxu0 %v392
  %1032 = vmatpush1.msra.mxu0 %v391
  %1033 = vmatprep.subr.mxu0 %v396
  %1034 = vmatpush1.msra.mxu0 %v395
  %1035 = vmatprep.subr.mxu0 %v400
  %1036 = vmatpush1.msra.mxu0 %v399
  %1037 = vmatprep.subr.mxu0 %v404
  %1038 = vmatpush1.msra.mxu0 %v403
  %1039 = vmatprep.subr.mxu0 %v408
  %1040 = vmatpush1.msra.mxu0 %v407
  %1041 = vmatprep.subr.mxu0 %v412
  %1042 = vmatpush1.msra.mxu0 %v411
  %1043 = vmatprep.subr.mxu0 %v416
  %1044 = vmatpush1.msra.mxu0 %v415
  %1045 = vmatprep.subr.mxu0 0.0
  %1046 = vmatpush1.msra.mxu0 0.0
  %1047 = vmatprep.subr.mxu0 0.0
  %1048 = vmatpush1.msra.mxu0 0.0
  %1049 = vmatprep.subr.mxu0 0.0
  %1050 = vmatpush1.msra.mxu0 0.0
  %1051 = vmatprep.subr.mxu0 0.0
  %1052 = vmatpush1.msra.mxu0 0.0
  %1053 = vmatprep.subr.mxu0 0.0
  %1054 = vmatpush1.msra.mxu0 0.0
  %1055 = vmatprep.subr.mxu0 0.0
  %1056 = vmatpush1.msra.mxu0 0.0
  %1057 = vmatprep.subr.mxu0 0.0
  %1058 = vmatpush1.msra.mxu0 0.0
  %1059 = vmatprep.subr.mxu0 0.0
  %1060 = vmatpush1.msra.mxu0 0.0
  %1061 = vmatprep.subr.mxu0 0.0
  %1062 = vmatpush1.msra.mxu0 0.0
  %1063 = vmatprep.subr.mxu0 0.0
  %1064 = vmatpush1.msra.mxu0 0.0
  %1065 = vmatprep.subr.mxu0 0.0
  %1066 = vmatpush1.msra.mxu0 0.0
  %1067 = vmatprep.subr.mxu0 0.0
  %1068 = vmatpush1.msra.mxu0 0.0
  %1069 = vmatprep.subr.mxu0 0.0
  %1070 = vmatpush1.msra.mxu0 0.0
  %1071 = vmatprep.subr.mxu0 0.0
  %1072 = vmatpush1.msra.mxu0 0.0
  %1073 = vmatprep.subr.mxu0 0.0
  %1074 = vmatpush1.msra.mxu0 0.0
  %1075 = vmatprep.subr.mxu0 0.0
  %1076 = vmatpush1.msra.mxu0 0.0
  %1077 = vmatprep.mubr.f32.mxu0 0.0
  %1078 = vmatmul.mubr.f32.gmra.mrb[0].mxu0 %v932
  %v1079 = vpop.f32.mrb[0].mxu0
  %v1080 = vadd.f32 0.0, %v1079
  %v1081 = vpop.f32.mrb[0].mxu0
  %v1082 = vadd.f32 0.0, %v1081
  %1083 = vdwg.mxu0
  %v1084 = vadd.f32 %v938, %v1009
  %v1085 = vadd.f32 %v939, %v1011
  %v1086 = vadd.f32 %v940, %v1080
  %v1087 = vadd.f32 %v941, %v1082
  %v1088 = vmul.f32 %v1084, 0.5
  %v1089 = vtanh.pop %v1088
  %v1090 = vmul.f32 %v1089, 0.5
  %v1091 = vadd.f32 %v1090, 0.5
  %v1092 = vmul.f32 %v1085, 0.5
  %v1093 = vtanh.pop %v1092
  %v1094 = vmul.f32 %v1093, 0.5
  %v1095 = vadd.f32 %v1094, 0.5
  %v1096 = vtanh.pop %v1086
  %v1097 = vmul.f32 %v1087, 0.5
  %v1098 = vtanh.pop %v1097
  %v1099 = vmul.f32 %v1098, 0.5
  %v1100 = vadd.f32 %v1099, 0.5
  %v1101 = vmul.f32 %v1095, %v930
  %v1102 = vmul.f32 %v1091, %v1096
  %v1103 = vadd.f32 %v1101, %v1102
  %v1104 = vtanh.pop %v1103
  %v1105 = vmul.f32 %v1100, %v1104
  %s1106 = scalar_lea.vmem [#allocation3], 24
  %1107 = vst [vmem:[%s1106] sm:$0xff] %v1105
  %s1108 = smul.u32 4, 4
  %s1109 = smul.addr %s1108, 8
  %s1110 = scalar_lea.vmem [#allocation2], %s1109
  %v1111 = vld [vmem:[%s1110] sm:$0xff]
  %v1112 = vld [vmem:[%s1110 + $0x8] sm:$0xff]
  %v1113 = vld [vmem:[%s1110 + $0x10] sm:$0xff]
  %v1114 = vld [vmem:[%s1110 + $0x18] sm:$0xff]
  %1115 = vmatprep.subr.mxu0 %v354
  %1116 = vmatpush1.msra.mxu0 %v353
  %1117 = vmatprep.subr.mxu0 %v358
  %1118 = vmatpush1.msra.mxu0 %v357
  %1119 = vmatprep.subr.mxu0 %v362
  %1120 = vmatpush1.msra.mxu0 %v361
  %1121 = vmatprep.subr.mxu0 %v366
  %1122 = vmatpush1.msra.mxu0 %v365
  %1123 = vmatprep.subr.mxu0 %v370
  %1124 = vmatpush1.msra.mxu0 %v369
  %1125 = vmatprep.subr.mxu0 %v374
  %1126 = vmatpush1.msra.mxu0 %v373
  %1127 = vmatprep.subr.mxu0 %v378
  %1128 = vmatpush1.msra.mxu0 %v377
  %1129 = vmatprep.subr.mxu0 %v382
  %1130 = vmatpush1.msra.mxu0 %v381
  %1131 = vmatprep.subr.mxu0 %v386
  %1132 = vmatpush1.msra.mxu0 %v385
  %1133 = vmatprep.subr.mxu0 %v390
  %1134 = vmatpush1.msra.mxu0 %v389
  %1135 = vmatprep.subr.mxu0 %v394
  %1136 = vmatpush1.msra.mxu0 %v393
  %1137 = vmatprep.subr.mxu0 %v398
  %1138 = vmatpush1.msra.mxu0 %v397
  %1139 = vmatprep.subr.mxu0 %v402
  %1140 = vmatpush1.msra.mxu0 %v401
  %1141 = vmatprep.subr.mxu0 %v406
  %1142 = vmatpush1.msra.mxu0 %v405
  %1143 = vmatprep.subr.mxu0 %v410
  %1144 = vmatpush1.msra.mxu0 %v409
  %1145 = vmatprep.subr.mxu0 %v414
  %1146 = vmatpush1.msra.mxu0 %v413
  %1147 = vmatprep.subr.mxu0 0.0
  %1148 = vmatpush1.msra.mxu0 0.0
  %1149 = vmatprep.subr.mxu0 0.0
  %1150 = vmatpush1.msra.mxu0 0.0
  %1151 = vmatprep.subr.mxu0 0.0
  %1152 = vmatpush1.msra.mxu0 0.0
  %1153 = vmatprep.subr.mxu0 0.0
  %1154 = vmatpush1.msra.mxu0 0.0
  %1155 = vmatprep.subr.mxu0 0.0
  %1156 = vmatpush1.msra.mxu0 0.0
  %1157 = vmatprep.subr.mxu0 0.0
  %1158 = vmatpush1.msra.mxu0 0.0
  %1159 = vmatprep.subr.mxu0 0.0
  %1160 = vmatpush1.msra.mxu0 0.0
  %1161 = vmatprep.subr.mxu0 0.0
  %1162 = vmatpush1.msra.mxu0 0.0
  %1163 = vmatprep.subr.mxu0 0.0
  %1164 = vmatpush1.msra.mxu0 0.0
  %1165 = vmatprep.subr.mxu0 0.0
  %1166 = vmatpush1.msra.mxu0 0.0
  %1167 = vmatprep.subr.mxu0 0.0
  %1168 = vmatpush1.msra.mxu0 0.0
  %1169 = vmatprep.subr.mxu0 0.0
  %1170 = vmatpush1.msra.mxu0 0.0
  %1171 = vmatprep.subr.mxu0 0.0
  %1172 = vmatpush1.msra.mxu0 0.0
  %1173 = vmatprep.subr.mxu0 0.0
  %1174 = vmatpush1.msra.mxu0 0.0
  %1175 = vmatprep.subr.mxu0 0.0
  %1176 = vmatpush1.msra.mxu0 0.0
  %1177 = vmatprep.subr.mxu0 0.0
  %1178 = vmatpush1.msra.mxu0 0.0
  %1179 = vmatprep.mubr.f32.mxu0 0.0
  %1180 = vmatmul.mubr.f32.gmra.mrb[0].mxu0 %v1105
  %v1181 = vpop.f32.mrb[0].mxu0
  %v1182 = vadd.f32 0.0, %v1181
  %v1183 = vpop.f32.mrb[0].mxu0
  %v1184 = vadd.f32 0.0, %v1183
  %1185 = vdwg.mxu0
  %1186 = vmatprep.subr.mxu0 %v356
  %1187 = vmatpush1.msra.mxu0 %v355
  %1188 = vmatprep.subr.mxu0 %v360
  %1189 = vmatpush1.msra.mxu0 %v359
  %1190 = vmatprep.subr.mxu0 %v364
  %1191 = vmatpush1.msra.mxu0 %v363
  %1192 = vmatprep.subr.mxu0 %v368
  %1193 = vmatpush1.msra.mxu0 %v367
  %1194 = vmatprep.subr.mxu0 %v372
  %1195 = vmatpush1.msra.mxu0 %v371
  %1196 = vmatprep.subr.mxu0 %v376
  %1197 = vmatpush1.msra.mxu0 %v375
  %1198 = vmatprep.subr.mxu0 %v380
  %1199 = vmatpush1.msra.mxu0 %v379
  %1200 = vmatprep.subr.mxu0 %v384
  %1201 = vmatpush1.msra.mxu0 %v383
  %1202 = vmatprep.subr.mxu0 %v388
  %1203 = vmatpush1.msra.mxu0 %v387
  %1204 = vmatprep.subr.mxu0 %v392
  %1205 = vmatpush1.msra.mxu0 %v391
  %1206 = vmatprep.subr.mxu0 %v396
  %1207 = vmatpush1.msra.mxu0 %v395
  %1208 = vmatprep.subr.mxu0 %v400
  %1209 = vmatpush1.msra.mxu0 %v399
  %1210 = vmatprep.subr.mxu0 %v404
  %1211 = vmatpush1.msra.mxu0 %v403
  %1212 = vmatprep.subr.mxu0 %v408
  %1213 = vmatpush1.msra.mxu0 %v407
  %1214 = vmatprep.subr.mxu0 %v412
  %1215 = vmatpush1.msra.mxu0 %v411
  %1216 = vmatprep.subr.mxu0 %v416
  %1217 = vmatpush1.msra.mxu0 %v415
  %1218 = vmatprep.subr.mxu0 0.0
  %1219 = vmatpush1.msra.mxu0 0.0
  %1220 = vmatprep.subr.mxu0 0.0
  %1221 = vmatpush1.msra.mxu0 0.0
  %1222 = vmatprep.subr.mxu0 0.0
  %1223 = vmatpush1.msra.mxu0 0.0
  %1224 = vmatprep.subr.mxu0 0.0
  %1225 = vmatpush1.msra.mxu0 0.0
  %1226 = vmatprep.subr.mxu0 0.0
  %1227 = vmatpush1.msra.mxu0 0.0
  %1228 = vmatprep.subr.mxu0 0.0
  %1229 = vmatpush1.msra.mxu0 0.0
  %1230 = vmatprep.subr.mxu0 0.0
  %1231 = vmatpush1.msra.mxu0 0.0
  %1232 = vmatprep.subr.mxu0 0.0
  %1233 = vmatpush1.msra.mxu0 0.0
  %1234 = vmatprep.subr.mxu0 0.0
  %1235 = vmatpush1.msra.mxu0 0.0
  %1236 = vmatprep.subr.mxu0 0.0
  %1237 = vmatpush1.msra.mxu0 0.0
  %1238 = vmatprep.subr.mxu0 0.0
  %1239 = vmatpush1.msra.mxu0 0.0
  %1240 = vmatprep.subr.mxu0 0.0
  %1241 = vmatpush1.msra.mxu0 0.0
  %1242 = vmatprep.subr.mxu0 0.0
  %1243 = vmatpush1.msra.mxu0 0.0
  %1244 = vmatprep.subr.mxu0 0.0
  %1245 = vmatpush1.msra.mxu0 0.0
  %1246 = vmatprep.subr.mxu0 0.0
  %1247 = vmatpush1.msra.mxu0 0.0
  %1248 = vmatprep.subr.mxu0 0.0
  %1249 = vmatpush1.msra.mxu0 0.0
  %1250 = vmatprep.mubr.f32.mxu0 0.0
  %1251 = vmatmul.mubr.f32.gmra.mrb[0].mxu0 %v1105
  %v1252 = vpop.f32.mrb[0].mxu0
  %v1253 = vadd.f32 0.0, %v1252
  %v1254 = vpop.f32.mrb[0].mxu0
  %v1255 = vadd.f32 0.0, %v1254
  %1256 = vdwg.mxu0
  %v1257 = vadd.f32 %v1111, %v1182
  %v1258 = vadd.f32 %v1112, %v1184
  %v1259 = vadd.f32 %v1113, %v1253
  %v1260 = vadd.f32 %v1114, %v1255
  %v1261 = vmul.f32 %v1257, 0.5
  %v1262 = vtanh.pop %v1261
  %v1263 = vmul.f32 %v1262, 0.5
  %v1264 = vadd.f32 %v1263, 0.5
  %v1265 = vmul.f32 %v1258, 0.5
  %v1266 = vtanh.pop %v1265
  %v1267 = vmul.f32 %v1266, 0.5
  %v1268 = vadd.f32 %v1267, 0.5
  %v1269 = vtanh.pop %v1259
  %v1270 = vmul.f32 %v1260, 0.5
  %v1271 = vtanh.pop %v1270
  %v1272 = vmul.f32 %v1271, 0.5
  %v1273 = vadd.f32 %v1272, 0.5
  %v1274 = vmul.f32 %v1268, %v1103
  %v1275 = vmul.f32 %v1264, %v1269
  %v1276 = vadd.f32 %v1274, %v1275
  %v1277 = vtanh.pop %v1276
  %v1278 = vmul.f32 %v1273, %v1277
  %s1279 = scalar_lea.vmem [#allocation3], 32
  %1280 = vst [vmem:[%s1279] sm:$0xff] %v1278
  %s1281 = smul.u32 5, 4
  %s1282 = smul.addr %s1281, 8
  %s1283 = scalar_lea.vmem [#allocation2], %s1282
  %v1284 = vld [vmem:[%s1283] sm:$0xff]
  %v1285 = vld [vmem:[%s1283 + $0x8] sm:$0xff]
  %v1286 = vld [vmem:[%s1283 + $0x10] sm:$0xff]
  %v1287 = vld [vmem:[%s1283 + $0x18] sm:$0xff]
  %1288 = vmatprep.subr.mxu0 %v354
  %1289 = vmatpush1.msra.mxu0 %v353
  %1290 = vmatprep.subr.mxu0 %v358
  %1291 = vmatpush1.msra.mxu0 %v357
  %1292 = vmatprep.subr.mxu0 %v362
  %1293 = vmatpush1.msra.mxu0 %v361
  %1294 = vmatprep.subr.mxu0 %v366
  %1295 = vmatpush1.msra.mxu0 %v365
  %1296 = vmatprep.subr.mxu0 %v370
  %1297 = vmatpush1.msra.mxu0 %v369
  %1298 = vmatprep.subr.mxu0 %v374
  %1299 = vmatpush1.msra.mxu0 %v373
  %1300 = vmatprep.subr.mxu0 %v378
  %1301 = vmatpush1.msra.mxu0 %v377
  %1302 = vmatprep.subr.mxu0 %v382
  %1303 = vmatpush1.msra.mxu0 %v381
  %1304 = vmatprep.subr.mxu0 %v386
  %1305 = vmatpush1.msra.mxu0 %v385
  %1306 = vmatprep.subr.mxu0 %v390
  %1307 = vmatpush1.msra.mxu0 %v389
  %1308 = vmatprep.subr.mxu0 %v394
  %1309 = vmatpush1.msra.mxu0 %v393
  %1310 = vmatprep.subr.mxu0 %v398
  %1311 = vmatpush1.msra.mxu0 %v397
  %1312 = vmatprep.subr.mxu0 %v402
  %1313 = vmatpush1.msra.mxu0 %v401
  %1314 = vmatprep.subr.mxu0 %v406
  %1315 = vmatpush1.msra.mxu0 %v405
  %1316 = vmatprep.subr.mxu0 %v410
  %1317 = vmatpush1.msra.mxu0 %v409
  %1318 = vmatprep.subr.mxu0 %v414
  %1319 = vmatpush1.msra.mxu0 %v413
  %1320 = vmatprep.subr.mxu0 0.0
  %1321 = vmatpush1.msra.mxu0 0.0
  %1322 = vmatprep.subr.mxu0 0.0
  %1323 = vmatpush1.msra.mxu0 0.0
  %1324 = vmatprep.subr.mxu0 0.0
  %1325 = vmatpush1.msra.mxu0 0.0
  %1326 = vmatprep.subr.mxu0 0.0
  %1327 = vmatpush1.msra.mxu0 0.0
  %1328 = vmatprep.subr.mxu0 0.0
  %1329 = vmatpush1.msra.mxu0 0.0
  %1330 = vmatprep.subr.mxu0 0.0
  %1331 = vmatpush1.msra.mxu0 0.0
  %1332 = vmatprep.subr.mxu0 0.0
  %1333 = vmatpush1.msra.mxu0 0.0
  %1334 = vmatprep.subr.mxu0 0.0
  %1335 = vmatpush1.msra.mxu0 0.0
  %1336 = vmatprep.subr.mxu0 0.0
  %1337 = vmatpush1.msra.mxu0 0.0
  %1338 = vmatprep.subr.mxu0 0.0
  %1339 = vmatpush1.msra.mxu0 0.0
  %1340 = vmatprep.subr.mxu0 0.0
  %1341 = vmatpush1.msra.mxu0 0.0
  %1342 = vmatprep.subr.mxu0 0.0
  %1343 = vmatpush1.msra.mxu0 0.0
  %1344 = vmatprep.subr.mxu0 0.0
  %1345 = vmatpush1.msra.mxu0 0.0
  %1346 = vmatprep.subr.mxu0 0.0
  %1347 = vmatpush1.msra.mxu0 0.0
  %1348 = vmatprep.subr.mxu0 0.0
  %1349 = vmatpush1.msra.mxu0 0.0
  %1350 = vmatprep.subr.mxu0 0.0
  %1351 = vmatpush1.msra.mxu0 0.0
  %1352 = vmatprep.mubr.f32.mxu0 0.0
  %1353 = vmatmul.mubr.f32.gmra.mrb[0].mxu0 %v1278
  %v1354 = vpop.f32.mrb[0].mxu0
  %v1355 = vadd.f32 0.0, %v1354
  %v1356 = vpop.f32.mrb[0].mxu0
  %v1357 = vadd.f32 0.0, %v1356
  %1358 = vdwg.mxu0
  %1359 = vmatprep.subr.mxu0 %v356
  %1360 = vmatpush1.msra.mxu0 %v355
  %1361 = vmatprep.subr.mxu0 %v360
  %1362 = vmatpush1.msra.mxu0 %v359
  %1363 = vmatprep.subr.mxu0 %v364
  %1364 = vmatpush1.msra.mxu0 %v363
  %1365 = vmatprep.subr.mxu0 %v368
  %1366 = vmatpush1.msra.mxu0 %v367
  %1367 = vmatprep.subr.mxu0 %v372
  %1368 = vmatpush1.msra.mxu0 %v371
  %1369 = vmatprep.subr.mxu0 %v376
  %1370 = vmatpush1.msra.mxu0 %v375
  %1371 = vmatprep.subr.mxu0 %v380
  %1372 = vmatpush1.msra.mxu0 %v379
  %1373 = vmatprep.subr.mxu0 %v384
  %1374 = vmatpush1.msra.mxu0 %v383
  %1375 = vmatprep.subr.mxu0 %v388
  %1376 = vmatpush1.msra.mxu0 %v387
  %1377 = vmatprep.subr.mxu0 %v392
  %1378 = vmatpush1.msra.mxu0 %v391
  %1379 = vmatprep.subr.mxu0 %v396
  %1380 = vmatpush1.msra.mxu0 %v395
  %1381 = vmatprep.subr.mxu0 %v400
  %1382 = vmatpush1.msra.mxu0 %v399
  %1383 = vmatprep.subr.mxu0 %v404
  %1384 = vmatpush1.msra.mxu0 %v403
  %1385 = vmatprep.subr.mxu0 %v408
  %1386 = vmatpush1.msra.mxu0 %v407
  %1387 = vmatprep.subr.mxu0 %v412
  %1388 = vmatpush1.msra.mxu0 %v411
  %1389 = vmatprep.subr.mxu0 %v416
  %1390 = vmatpush1.msra.mxu0 %v415
  %1391 = vmatprep.subr.mxu0 0.0
  %1392 = vmatpush1.msra.mxu0 0.0
  %1393 = vmatprep.subr.mxu0 0.0
  %1394 = vmatpush1.msra.mxu0 0.0
  %1395 = vmatprep.subr.mxu0 0.0
  %1396 = vmatpush1.msra.mxu0 0.0
  %1397 = vmatprep.subr.mxu0 0.0
  %1398 = vmatpush1.msra.mxu0 0.0
  %1399 = vmatprep.subr.mxu0 0.0
  %1400 = vmatpush1.msra.mxu0 0.0
  %1401 = vmatprep.subr.mxu0 0.0
  %1402 = vmatpush1.msra.mxu0 0.0
  %1403 = vmatprep.subr.mxu0 0.0
  %1404 = vmatpush1.msra.mxu0 0.0
  %1405 = vmatprep.subr.mxu0 0.0
  %1406 = vmatpush1.msra.mxu0 0.0
  %1407 = vmatprep.subr.mxu0 0.0
  %1408 = vmatpush1.msra.mxu0 0.0
  %1409 = vmatprep.subr.mxu0 0.0
  %1410 = vmatpush1.msra.mxu0 0.0
  %1411 = vmatprep.subr.mxu0 0.0
  %1412 = vmatpush1.msra.mxu0 0.0
  %1413 = vmatprep.subr.mxu0 0.0
  %1414 = vmatpush1.msra.mxu0 0.0
  %1415 = vmatprep.subr.mxu0 0.0
  %1416 = vmatpush1.msra.mxu0 0.0
  %1417 = vmatprep.subr.mxu0 0.0
  %1418 = vmatpush1.msra.mxu0 0.0
  %1419 = vmatprep.subr.mxu0 0.0
  %1420 = vmatpush1.msra.mxu0 0.0
  %1421 = vmatprep.subr.mxu0 0.0
  %1422 = vmatpush1.msra.mxu0 0.0
  %1423 = vmatprep.mubr.f32.mxu0 0.0
  %1424 = vmatmul.mubr.f32.gmra.mrb[0].mxu0 %v1278
  %v1425 = vpop.f32.mrb[0].mxu0
  %v1426 = vadd.f32 0.0, %v1425
  %v1427 = vpop.f32.mrb[0].mxu0
  %v1428 = vadd.f32 0.0, %v1427
  %1429 = vdwg.mxu0
  %v1430 = vadd.f32 %v1284, %v1355
  %v1431 = vadd.f32 %v1285, %v1357
  %v1432 = vadd.f32 %v1286, %v1426
  %v1433 = vadd.f32 %v1287, %v1428
  %v1434 = vmul.f32 %v1430, 0.5
  %v1435 = vtanh.pop %v1434
  %v1436 = vmul.f32 %v1435, 0.5
  %v1437 = vadd.f32 %v1436, 0.5
  %v1438 = vmul.f32 %v1431, 0.5
  %v1439 = vtanh.pop %v1438
  %v1440 = vmul.f32 %v1439, 0.5
  %v1441 = vadd.f32 %v1440, 0.5
  %v1442 = vtanh.pop %v1432
  %v1443 = vmul.f32 %v1433, 0.5
  %v1444 = vtanh.pop %v1443
  %v1445 = vmul.f32 %v1444, 0.5
  %v1446 = vadd.f32 %v1445, 0.5
  %v1447 = vmul.f32 %v1441, %v1276
  %v1448 = vmul.f32 %v1437, %v1442
  %v1449 = vadd.f32 %v1447, %v1448
  %v1450 = vtanh.pop %v1449
  %v1451 = vmul.f32 %v1446, %v1450
  %s1452 = scalar_lea.vmem [#allocation3], 40
  %1453 = vst [vmem:[%s1452] sm:$0xff] %v1451
  %s1454 = smul.u32 6, 4
  %s1455 = smul.addr %s1454, 8
  %s1456 = scalar_lea.vmem [#allocation2], %s1455
  %v1457 = vld [vmem:[%s1456] sm:$0xff]
  %v1458 = vld [vmem:[%s1456 + $0x8] sm:$0xff]
  %v1459 = vld [vmem:[%s1456 + $0x10] sm:$0xff]
  %v1460 = vld [vmem:[%s1456 + $0x18] sm:$0xff]
  %1461 = vmatprep.subr.mxu0 %v354
  %1462 = vmatpush1.msra.mxu0 %v353
  %1463 = vmatprep.subr.mxu0 %v358
  %1464 = vmatpush1.msra.mxu0 %v357
  %1465 = vmatprep.subr.mxu0 %v362
  %1466 = vmatpush1.msra.mxu0 %v361
  %1467 = vmatprep.subr.mxu0 %v366
  %1468 = vmatpush1.msra.mxu0 %v365
  %1469 = vmatprep.subr.mxu0 %v370
  %1470 = vmatpush1.msra.mxu0 %v369
  %1471 = vmatprep.subr.mxu0 %v374
  %1472 = vmatpush1.msra.mxu0 %v373
  %1473 = vmatprep.subr.mxu0 %v378
  %1474 = vmatpush1.msra.mxu0 %v377
  %1475 = vmatprep.subr.mxu0 %v382
  %1476 = vmatpush1.msra.mxu0 %v381
  %1477 = vmatprep.subr.mxu0 %v386
  %1478 = vmatpush1.msra.mxu0 %v385
  %1479 = vmatprep.subr.mxu0 %v390
  %1480 = vmatpush1.msra.mxu0 %v389
  %1481 = vmatprep.subr.mxu0 %v394
  %1482 = vmatpush1.msra.mxu0 %v393
  %1483 = vmatprep.subr.mxu0 %v398
  %1484 = vmatpush1.msra.mxu0 %v397
  %1485 = vmatprep.subr.mxu0 %v402
  %1486 = vmatpush1.msra.mxu0 %v401
  %1487 = vmatprep.subr.mxu0 %v406
  %1488 = vmatpush1.msra.mxu0 %v405
  %1489 = vmatprep.subr.mxu0 %v410
  %1490 = vmatpush1.msra.mxu0 %v409
  %1491 = vmatprep.subr.mxu0 %v414
  %1492 = vmatpush1.msra.mxu0 %v413
  %1493 = vmatprep.subr.mxu0 0.0
  %1494 = vmatpush1.msra.mxu0 0.0
  %1495 = vmatprep.subr.mxu0 0.0
  %1496 = vmatpush1.msra.mxu0 0.0
  %1497 = vmatprep.subr.mxu0 0.0
  %1498 = vmatpush1.msra.mxu0 0.0
  %1499 = vmatprep.subr.mxu0 0.0
  %1500 = vmatpush1.msra.mxu0 0.0
  %1501 = vmatprep.subr.mxu0 0.0
  %1502 = vmatpush1.msra.mxu0 0.0
  %1503 = vmatprep.subr.mxu0 0.0
  %1504 = vmatpush1.msra.mxu0 0.0
  %1505 = vmatprep.subr.mxu0 0.0
  %1506 = vmatpush1.msra.mxu0 0.0
  %1507 = vmatprep.subr.mxu0 0.0
  %1508 = vmatpush1.msra.mxu0 0.0
  %1509 = vmatprep.subr.mxu0 0.0
  %1510 = vmatpush1.msra.mxu0 0.0
  %1511 = vmatprep.subr.mxu0 0.0
  %1512 = vmatpush1.msra.mxu0 0.0
  %1513 = vmatprep.subr.mxu0 0.0
  %1514 = vmatpush1.msra.mxu0 0.0
  %1515 = vmatprep.subr.mxu0 0.0
  %1516 = vmatpush1.msra.mxu0 0.0
  %1517 = vmatprep.subr.mxu0 0.0
  %1518 = vmatpush1.msra.mxu0 0.0
  %1519 = vmatprep.subr.mxu0 0.0
  %1520 = vmatpush1.msra.mxu0 0.0
  %1521 = vmatprep.subr.mxu0 0.0
  %1522 = vmatpush1.msra.mxu0 0.0
  %1523 = vmatprep.subr.mxu0 0.0
  %1524 = vmatpush1.msra.mxu0 0.0
  %1525 = vmatprep.mubr.f32.mxu0 0.0
  %1526 = vmatmul.mubr.f32.gmra.mrb[0].mxu0 %v1451
  %v1527 = vpop.f32.mrb[0].mxu0
  %v1528 = vadd.f32 0.0, %v1527
  %v1529 = vpop.f32.mrb[0].mxu0
  %v1530 = vadd.f32 0.0, %v1529
  %1531 = vdwg.mxu0
  %1532 = vmatprep.subr.mxu0 %v356
  %1533 = vmatpush1.msra.mxu0 %v355
  %1534 = vmatprep.subr.mxu0 %v360
  %1535 = vmatpush1.msra.mxu0 %v359
  %1536 = vmatprep.subr.mxu0 %v364
  %1537 = vmatpush1.msra.mxu0 %v363
  %1538 = vmatprep.subr.mxu0 %v368
  %1539 = vmatpush1.msra.mxu0 %v367
  %1540 = vmatprep.subr.mxu0 %v372
  %1541 = vmatpush1.msra.mxu0 %v371
  %1542 = vmatprep.subr.mxu0 %v376
  %1543 = vmatpush1.msra.mxu0 %v375
  %1544 = vmatprep.subr.mxu0 %v380
  %1545 = vmatpush1.msra.mxu0 %v379
  %1546 = vmatprep.subr.mxu0 %v384
  %1547 = vmatpush1.msra.mxu0 %v383
  %1548 = vmatprep.subr.mxu0 %v388
  %1549 = vmatpush1.msra.mxu0 %v387
  %1550 = vmatprep.subr.mxu0 %v392
  %1551 = vmatpush1.msra.mxu0 %v391
  %1552 = vmatprep.subr.mxu0 %v396
  %1553 = vmatpush1.msra.mxu0 %v395
  %1554 = vmatprep.subr.mxu0 %v400
  %1555 = vmatpush1.msra.mxu0 %v399
  %1556 = vmatprep.subr.mxu0 %v404
  %1557 = vmatpush1.msra.mxu0 %v403
  %1558 = vmatprep.subr.mxu0 %v408
  %1559 = vmatpush1.msra.mxu0 %v407
  %1560 = vmatprep.subr.mxu0 %v412
  %1561 = vmatpush1.msra.mxu0 %v411
  %1562 = vmatprep.subr.mxu0 %v416
  %1563 = vmatpush1.msra.mxu0 %v415
  %1564 = vmatprep.subr.mxu0 0.0
  %1565 = vmatpush1.msra.mxu0 0.0
  %1566 = vmatprep.subr.mxu0 0.0
  %1567 = vmatpush1.msra.mxu0 0.0
  %1568 = vmatprep.subr.mxu0 0.0
  %1569 = vmatpush1.msra.mxu0 0.0
  %1570 = vmatprep.subr.mxu0 0.0
  %1571 = vmatpush1.msra.mxu0 0.0
  %1572 = vmatprep.subr.mxu0 0.0
  %1573 = vmatpush1.msra.mxu0 0.0
  %1574 = vmatprep.subr.mxu0 0.0
  %1575 = vmatpush1.msra.mxu0 0.0
  %1576 = vmatprep.subr.mxu0 0.0
  %1577 = vmatpush1.msra.mxu0 0.0
  %1578 = vmatprep.subr.mxu0 0.0
  %1579 = vmatpush1.msra.mxu0 0.0
  %1580 = vmatprep.subr.mxu0 0.0
  %1581 = vmatpush1.msra.mxu0 0.0
  %1582 = vmatprep.subr.mxu0 0.0
  %1583 = vmatpush1.msra.mxu0 0.0
  %1584 = vmatprep.subr.mxu0 0.0
  %1585 = vmatpush1.msra.mxu0 0.0
  %1586 = vmatprep.subr.mxu0 0.0
  %1587 = vmatpush1.msra.mxu0 0.0
  %1588 = vmatprep.subr.mxu0 0.0
  %1589 = vmatpush1.msra.mxu0 0.0
  %1590 = vmatprep.subr.mxu0 0.0
  %1591 = vmatpush1.msra.mxu0 0.0
  %1592 = vmatprep.subr.mxu0 0.0
  %1593 = vmatpush1.msra.mxu0 0.0
  %1594 = vmatprep.subr.mxu0 0.0
  %1595 = vmatpush1.msra.mxu0 0.0
  %1596 = vmatprep.mubr.f32.mxu0 0.0
  %1597 = vmatmul.mubr.f32.gmra.mrb[0].mxu0 %v1451
  %v1598 = vpop.f32.mrb[0].mxu0
  %v1599 = vadd.f32 0.0, %v1598
  %v1600 = vpop.f32.mrb[0].mxu0
  %v1601 = vadd.f32 0.0, %v1600
  %1602 = vdwg.mxu0
  %v1603 = vadd.f32 %v1457, %v1528
  %v1604 = vadd.f32 %v1458, %v1530
  %v1605 = vadd.f32 %v1459, %v1599
  %v1606 = vadd.f32 %v1460, %v1601
  %v1607 = vmul.f32 %v1603, 0.5
  %v1608 = vtanh.pop %v1607
  %v1609 = vmul.f32 %v1608, 0.5
  %v1610 = vadd.f32 %v1609, 0.5
  %v1611 = vmul.f32 %v1604, 0.5
  %v1612 = vtanh.pop %v1611
  %v1613 = vmul.f32 %v1612, 0.5
  %v1614 = vadd.f32 %v1613, 0.5
  %v1615 = vtanh.pop %v1605
  %v1616 = vmul.f32 %v1606, 0.5
  %v1617 = vtanh.pop %v1616
  %v1618 = vmul.f32 %v1617, 0.5
  %v1619 = vadd.f32 %v1618, 0.5
  %v1620 = vmul.f32 %v1614, %v1449
  %v1621 = vmul.f32 %v1610, %v1615
  %v1622 = vadd.f32 %v1620, %v1621
  %v1623 = vtanh.pop %v1622
  %v1624 = vmul.f32 %v1619, %v1623
  %s1625 = scalar_lea.vmem [#allocation3], 48
  %1626 = vst [vmem:[%s1625] sm:$0xff] %v1624
  %s1627 = smul.u32 7, 4
  %s1628 = smul.addr %s1627, 8
  %s1629 = scalar_lea.vmem [#allocation2], %s1628
  %v1630 = vld [vmem:[%s1629] sm:$0xff]
  %v1631 = vld [vmem:[%s1629 + $0x8] sm:$0xff]
  %v1632 = vld [vmem:[%s1629 + $0x10] sm:$0xff]
  %v1633 = vld [vmem:[%s1629 + $0x18] sm:$0xff]
  %1634 = vmatprep.subr.mxu0 %v354
  %1635 = vmatpush1.msra.mxu0 %v353
  %1636 = vmatprep.subr.mxu0 %v358
  %1637 = vmatpush1.msra.mxu0 %v357
  %1638 = vmatprep.subr.mxu0 %v362
  %1639 = vmatpush1.msra.mxu0 %v361
  %1640 = vmatprep.subr.mxu0 %v366
  %1641 = vmatpush1.msra.mxu0 %v365
  %1642 = vmatprep.subr.mxu0 %v370
  %1643 = vmatpush1.msra.mxu0 %v369
  %1644 = vmatprep.subr.mxu0 %v374
  %1645 = vmatpush1.msra.mxu0 %v373
  %1646 = vmatprep.subr.mxu0 %v378
  %1647 = vmatpush1.msra.mxu0 %v377
  %1648 = vmatprep.subr.mxu0 %v382
  %1649 = vmatpush1.msra.mxu0 %v381
  %1650 = vmatprep.subr.mxu0 %v386
  %1651 = vmatpush1.msra.mxu0 %v385
  %1652 = vmatprep.subr.mxu0 %v390
  %1653 = vmatpush1.msra.mxu0 %v389
  %1654 = vmatprep.subr.mxu0 %v394
  %1655 = vmatpush1.msra.mxu0 %v393
  %1656 = vmatprep.subr.mxu0 %v398
  %1657 = vmatpush1.msra.mxu0 %v397
  %1658 = vmatprep.subr.mxu0 %v402
  %1659 = vmatpush1.msra.mxu0 %v401
  %1660 = vmatprep.subr.mxu0 %v406
  %1661 = vmatpush1.msra.mxu0 %v405
  %1662 = vmatprep.subr.mxu0 %v410
  %1663 = vmatpush1.msra.mxu0 %v409
  %1664 = vmatprep.subr.mxu0 %v414
  %1665 = vmatpush1.msra.mxu0 %v413
  %1666 = vmatprep.subr.mxu0 0.0
  %1667 = vmatpush1.msra.mxu0 0.0
  %1668 = vmatprep.subr.mxu0 0.0
  %1669 = vmatpush1.msra.mxu0 0.0
  %1670 = vmatprep.subr.mxu0 0.0
  %1671 = vmatpush1.msra.mxu0 0.0
  %1672 = vmatprep.subr.mxu0 0.0
  %1673 = vmatpush1.msra.mxu0 0.0
  %1674 = vmatprep.subr.mxu0 0.0
  %1675 = vmatpush1.msra.mxu0 0.0
  %1676 = vmatprep.subr.mxu0 0.0
  %1677 = vmatpush1.msra.mxu0 0.0
  %1678 = vmatprep.subr.mxu0 0.0
  %1679 = vmatpush1.msra.mxu0 0.0
  %1680 = vmatprep.subr.mxu0 0.0
  %1681 = vmatpush1.msra.mxu0 0.0
  %1682 = vmatprep.subr.mxu0 0.0
  %1683 = vmatpush1.msra.mxu0 0.0
  %1684 = vmatprep.subr.mxu0 0.0
  %1685 = vmatpush1.msra.mxu0 0.0
  %1686 = vmatprep.subr.mxu0 0.0
  %1687 = vmatpush1.msra.mxu0 0.0
  %1688 = vmatprep.subr.mxu0 0.0
  %1689 = vmatpush1.msra.mxu0 0.0
  %1690 = vmatprep.subr.mxu0 0.0
  %1691 = vmatpush1.msra.mxu0 0.0
  %1692 = vmatprep.subr.mxu0 0.0
  %1693 = vmatpush1.msra.mxu0 0.0
  %1694 = vmatprep.subr.mxu0 0.0
  %1695 = vmatpush1.msra.mxu0 0.0
  %1696 = vmatprep.subr.mxu0 0.0
  %1697 = vmatpush1.msra.mxu0 0.0
  %1698 = vmatprep.mubr.f32.mxu0 0.0
  %1699 = vmatmul.mubr.f32.gmra.mrb[0].mxu0 %v1624
  %v1700 = vpop.f32.mrb[0].mxu0
  %v1701 = vadd.f32 0.0, %v1700
  %v1702 = vpop.f32.mrb[0].mxu0
  %v1703 = vadd.f32 0.0, %v1702
  %1704 = vdwg.mxu0
  %1705 = vmatprep.subr.mxu0 %v356
  %1706 = vmatpush1.msra.mxu0 %v355
  %1707 = vmatprep.subr.mxu0 %v360
  %1708 = vmatpush1.msra.mxu0 %v359
  %1709 = vmatprep.subr.mxu0 %v364
  %1710 = vmatpush1.msra.mxu0 %v363
  %1711 = vmatprep.subr.mxu0 %v368
  %1712 = vmatpush1.msra.mxu0 %v367
  %1713 = vmatprep.subr.mxu0 %v372
  %1714 = vmatpush1.msra.mxu0 %v371
  %1715 = vmatprep.subr.mxu0 %v376
  %1716 = vmatpush1.msra.mxu0 %v375
  %1717 = vmatprep.subr.mxu0 %v380
  %1718 = vmatpush1.msra.mxu0 %v379
  %1719 = vmatprep.subr.mxu0 %v384
  %1720 = vmatpush1.msra.mxu0 %v383
  %1721 = vmatprep.subr.mxu0 %v388
  %1722 = vmatpush1.msra.mxu0 %v387
  %1723 = vmatprep.subr.mxu0 %v392
  %1724 = vmatpush1.msra.mxu0 %v391
  %1725 = vmatprep.subr.mxu0 %v396
  %1726 = vmatpush1.msra.mxu0 %v395
  %1727 = vmatprep.subr.mxu0 %v400
  %1728 = vmatpush1.msra.mxu0 %v399
  %1729 = vmatprep.subr.mxu0 %v404
  %1730 = vmatpush1.msra.mxu0 %v403
  %1731 = vmatprep.subr.mxu0 %v408
  %1732 = vmatpush1.msra.mxu0 %v407
  %1733 = vmatprep.subr.mxu0 %v412
  %1734 = vmatpush1.msra.mxu0 %v411
  %1735 = vmatprep.subr.mxu0 %v416
  %1736 = vmatpush1.msra.mxu0 %v415
  %1737 = vmatprep.subr.mxu0 0.0
  %1738 = vmatpush1.msra.mxu0 0.0
  %1739 = vmatprep.subr.mxu0 0.0
  %1740 = vmatpush1.msra.mxu0 0.0
  %1741 = vmatprep.subr.mxu0 0.0
  %1742 = vmatpush1.msra.mxu0 0.0
  %1743 = vmatprep.subr.mxu0 0.0
  %1744 = vmatpush1.msra.mxu0 0.0
  %1745 = vmatprep.subr.mxu0 0.0
  %1746 = vmatpush1.msra.mxu0 0.0
  %1747 = vmatprep.subr.mxu0 0.0
  %1748 = vmatpush1.msra.mxu0 0.0
  %1749 = vmatprep.subr.mxu0 0.0
  %1750 = vmatpush1.msra.mxu0 0.0
  %1751 = vmatprep.subr.mxu0 0.0
  %1752 = vmatpush1.msra.mxu0 0.0
  %1753 = vmatprep.subr.mxu0 0.0
  %1754 = vmatpush1.msra.mxu0 0.0
  %1755 = vmatprep.subr.mxu0 0.0
  %1756 = vmatpush1.msra.mxu0 0.0
  %1757 = vmatprep.subr.mxu0 0.0
  %1758 = vmatpush1.msra.mxu0 0.0
  %1759 = vmatprep.subr.mxu0 0.0
  %1760 = vmatpush1.msra.mxu0 0.0
  %1761 = vmatprep.subr.mxu0 0.0
  %1762 = vmatpush1.msra.mxu0 0.0
  %1763 = vmatprep.subr.mxu0 0.0
  %1764 = vmatpush1.msra.mxu0 0.0
  %1765 = vmatprep.subr.mxu0 0.0
  %1766 = vmatpush1.msra.mxu0 0.0
  %1767 = vmatprep.subr.mxu0 0.0
  %1768 = vmatpush1.msra.mxu0 0.0
  %1769 = vmatprep.mubr.f32.mxu0 0.0
  %1770 = vmatmul.mubr.f32.gmra.mrb[0].mxu0 %v1624
  %v1771 = vpop.f32.mrb[0].mxu0
  %v1772 = vadd.f32 0.0, %v1771
  %v1773 = vpop.f32.mrb[0].mxu0
  %v1774 = vadd.f32 0.0, %v1773
  %1775 = vdwg.mxu0
  %v1776 = vadd.f32 %v1630, %v1701
  %v1777 = vadd.f32 %v1631, %v1703
  %v1778 = vadd.f32 %v1632, %v1772
  %v1779 = vadd.f32 %v1633, %v1774
  %v1780 = vmul.f32 %v1776, 0.5
  %v1781 = vtanh.pop %v1780
  %v1782 = vmul.f32 %v1781, 0.5
  %v1783 = vadd.f32 %v1782, 0.5
  %v1784 = vmul.f32 %v1777, 0.5
  %v1785 = vtanh.pop %v1784
  %v1786 = vmul.f32 %v1785, 0.5
  %v1787 = vadd.f32 %v1786, 0.5
  %v1788 = vtanh.pop %v1778
  %v1789 = vmul.f32 %v1779, 0.5
  %v1790 = vtanh.pop %v1789
  %v1791 = vmul.f32 %v1790, 0.5
  %v1792 = vadd.f32 %v1791, 0.5
  %v1793 = vmul.f32 %v1787, %v1622
  %v1794 = vmul.f32 %v1783, %v1788
  %v1795 = vadd.f32 %v1793, %v1794
  %v1796 = vtanh.pop %v1795
  %v1797 = vmul.f32 %v1792, %v1796
  %s1798 = scalar_lea.vmem [#allocation3], 56
  %1799 = vst [vmem:[%s1798] sm:$0xff] %v1797
  %v1800 = vld [vmem:[#allocation3] sm:$0xff]
  %v1801 = vld [vmem:[#allocation3 + $0x8] sm:$0xff]
  %v1802 = vld [vmem:[#allocation3 + $0x10] sm:$0xff]
  %v1803 = vld [vmem:[#allocation3 + $0x18] sm:$0xff]
  %v1804 = vld [vmem:[#allocation3 + $0x20] sm:$0xff]
  %v1805 = vld [vmem:[#allocation3 + $0x28] sm:$0xff]
  %v1806 = vld [vmem:[#allocation3 + $0x30] sm:$0xff]
  %v1807 = vld [vmem:[#allocation3 + $0x38] sm:$0xff]
  %v1808 = vld [vmem:[%s4] sm:$0xff]
  %v1809 = vld [vmem:[%s4 + $0x8] sm:$0xff]
  %v1810 = vld [vmem:[%s4 + $0x10] sm:$0xff]
  %v1811 = vld [vmem:[%s4 + $0x18] sm:$0xff]
  %v1812 = vld [vmem:[%s4 + $0x20] sm:$0xff]
  %v1813 = vld [vmem:[%s4 + $0x28] sm:$0xff]
  %v1814 = vld [vmem:[%s4 + $0x30] sm:$0xff]
  %v1815 = vld [vmem:[%s4 + $0x38] sm:$0xff]
  %v1816 = vld [vmem:[%s4 + $0x40] sm:$0xff]
  %v1817 = vld [vmem:[%s4 + $0x48] sm:$0xff]
  %v1818 = vld [vmem:[%s4 + $0x50] sm:$0xff]
  %v1819 = vld [vmem:[%s4 + $0x58] sm:$0xff]
  %v1820 = vld [vmem:[%s4 + $0x60] sm:$0xff]
  %v1821 = vld [vmem:[%s4 + $0x68] sm:$0xff]
  %v1822 = vld [vmem:[%s4 + $0x70] sm:$0xff]
  %v1823 = vld [vmem:[%s4 + $0x78] sm:$0xff]
  %v1824 = vld [vmem:[#allocation4] sm:$0x1]
  %v1826 = vlaneseq
  %v1827 = vshrl.u32 %v1826, 7
  %v1828 = vsub.s32 0, %v1827
  %v1829 = vrot.slane %v1824, %v1828
  %1831 = vmatprep.subr.mxu0 0.0
  %1832 = vmatpush1.msra.mxu0 %v1808
  %1833 = vmatprep.subr.mxu0 0.0
  %1834 = vmatpush1.msra.mxu0 %v1809
  %1835 = vmatprep.subr.mxu0 0.0
  %1836 = vmatpush1.msra.mxu0 %v1810
  %1837 = vmatprep.subr.mxu0 0.0
  %1838 = vmatpush1.msra.mxu0 %v1811
  %1839 = vmatprep.subr.mxu0 0.0
  %1840 = vmatpush1.msra.mxu0 %v1812
  %1841 = vmatprep.subr.mxu0 0.0
  %1842 = vmatpush1.msra.mxu0 %v1813
  %1843 = vmatprep.subr.mxu0 0.0
  %1844 = vmatpush1.msra.mxu0 %v1814
  %1845 = vmatprep.subr.mxu0 0.0
  %1846 = vmatpush1.msra.mxu0 %v1815
  %1847 = vmatprep.subr.mxu0 0.0
  %1848 = vmatpush1.msra.mxu0 %v1816
  %1849 = vmatprep.subr.mxu0 0.0
  %1850 = vmatpush1.msra.mxu0 %v1817
  %1851 = vmatprep.subr.mxu0 0.0
  %1852 = vmatpush1.msra.mxu0 %v1818
  %1853 = vmatprep.subr.mxu0 0.0
  %1854 = vmatpush1.msra.mxu0 %v1819
  %1855 = vmatprep.subr.mxu0 0.0
  %1856 = vmatpush1.msra.mxu0 %v1820
  %1857 = vmatprep.subr.mxu0 0.0
  %1858 = vmatpush1.msra.mxu0 %v1821
  %1859 = vmatprep.subr.mxu0 0.0
  %1860 = vmatpush1.msra.mxu0 %v1822
  %1861 = vmatprep.subr.mxu0 0.0
  %1862 = vmatpush1.msra.mxu0 %v1823
  %1863 = vmatprep.subr.mxu0 0.0
  %1864 = vmatpush1.msra.mxu0 0.0
  %1865 = vmatprep.subr.mxu0 0.0
  %1866 = vmatpush1.msra.mxu0 0.0
  %1867 = vmatprep.subr.mxu0 0.0
  %1868 = vmatpush1.msra.mxu0 0.0
  %1869 = vmatprep.subr.mxu0 0.0
  %1870 = vmatpush1.msra.mxu0 0.0
  %1871 = vmatprep.subr.mxu0 0.0
  %1872 = vmatpush1.msra.mxu0 0.0
  %1873 = vmatprep.subr.mxu0 0.0
  %1874 = vmatpush1.msra.mxu0 0.0
  %1875 = vmatprep.subr.mxu0 0.0
  %1876 = vmatpush1.msra.mxu0 0.0
  %1877 = vmatprep.subr.mxu0 0.0
  %1878 = vmatpush1.msra.mxu0 0.0
  %1879 = vmatprep.subr.mxu0 0.0
  %1880 = vmatpush1.msra.mxu0 0.0
  %1881 = vmatprep.subr.mxu0 0.0
  %1882 = vmatpush1.msra.mxu0 0.0
  %1883 = vmatprep.subr.mxu0 0.0
  %1884 = vmatpush1.msra.mxu0 0.0
  %1885 = vmatprep.subr.mxu0 0.0
  %1886 = vmatpush1.msra.mxu0 0.0
  %1887 = vmatprep.subr.mxu0 0.0
  %1888 = vmatpush1.msra.mxu0 0.0
  %1889 = vmatprep.subr.mxu0 0.0
  %1890 = vmatpush1.msra.mxu0 0.0
  %1891 = vmatprep.subr.mxu0 0.0
  %1892 = vmatpush1.msra.mxu0 0.0
  %1893 = vmatprep.subr.mxu0 0.0
  %1894 = vmatpush1.msra.mxu0 0.0
  %1895 = vmatprep.mubr.f32.mxu0 0.0
  %1896 = vmatmul.mubr.f32.gmra.mrb[0].mxu0 %v1800
  %v1897 = vpop.f32.mrb[0].mxu0
  %v1898 = vadd.f32 %v1829, %v1897
  %v1899 = vpop.f32.mrb[0].mxu0
  %1900 = vmatprep.mubr.f32.mxu0 0.0
  %1901 = vmatmul.mubr.f32.gmra.mrb[0].mxu0 %v1801
  %v1902 = vpop.f32.mrb[0].mxu0
  %v1903 = vadd.f32 %v1829, %v1902
  %v1904 = vpop.f32.mrb[0].mxu0
  %1905 = vmatprep.mubr.f32.mxu0 0.0
  %1906 = vmatmul.mubr.f32.gmra.mrb[0].mxu0 %v1802
  %v1907 = vpop.f32.mrb[0].mxu0
  %v1908 = vadd.f32 %v1829, %v1907
  %v1909 = vpop.f32.mrb[0].mxu0
  %1910 = vmatprep.mubr.f32.mxu0 0.0
  %1911 = vmatmul.mubr.f32.gmra.mrb[0].mxu0 %v1803
  %v1912 = vpop.f32.mrb[0].mxu0
  %v1913 = vadd.f32 %v1829, %v1912
  %v1914 = vpop.f32.mrb[0].mxu0
  %1915 = vmatprep.mubr.f32.mxu0 0.0
  %1916 = vmatmul.mubr.f32.gmra.mrb[0].mxu0 %v1804
  %v1917 = vpop.f32.mrb[0].mxu0
  %v1918 = vadd.f32 %v1829, %v1917
  %v1919 = vpop.f32.mrb[0].mxu0
  %1920 = vmatprep.mubr.f32.mxu0 0.0
  %1921 = vmatmul.mubr.f32.gmra.mrb[0].mxu0 %v1805
  %v1922 = vpop.f32.mrb[0].mxu0
  %v1923 = vadd.f32 %v1829, %v1922
  %v1924 = vpop.f32.mrb[0].mxu0
  %1925 = vmatprep.mubr.f32.mxu0 0.0
  %1926 = vmatmul.mubr.f32.gmra.mrb[0].mxu0 %v1806
  %v1927 = vpop.f32.mrb[0].mxu0
  %v1928 = vadd.f32 %v1829, %v1927
  %v1929 = vpop.f32.mrb[0].mxu0
  %1930 = vmatprep.mubr.f32.mxu0 0.0
  %1931 = vmatmul.mubr.f32.gmra.mrb[0].mxu0 %v1807
  %v1932 = vpop.f32.mrb[0].mxu0
  %v1933 = vadd.f32 %v1829, %v1932
  %v1934 = vpop.f32.mrb[0].mxu0
  %1935 = vdwg.mxu0
  %vm1936 = vcmask 7168
  %1937 = vst.msk [vmem:[%s6] sm:$0xff] %vm1936, %v1898
  %1938 = vst.msk [vmem:[%s6 + $0x8] sm:$0xff] %vm1936, %v1903
  %1939 = vst.msk [vmem:[%s6 + $0x10] sm:$0xff] %vm1936, %v1908
  %1940 = vst.msk [vmem:[%s6 + $0x18] sm:$0xff] %vm1936, %v1913
  %1941 = vst.msk [vmem:[%s6 + $0x20] sm:$0xff] %vm1936, %v1918
  %1942 = vst.msk [vmem:[%s6 + $0x28] sm:$0xff] %vm1936, %v1923
  %1943 = vst.msk [vmem:[%s6 + $0x30] sm:$0xff] %vm1936, %v1928
  %1944 = vst.msk [vmem:[%s6 + $0x38] sm:$0xff] %vm1936, %v1933
  // Predicated region
  $region26: #{lstm_reg_forward.1} parent=0 // pred_check
    _
  $region27: #{lstm_reg_forward.1} parent=0 // pred_check_branch
    %1946 = sbr.rel (0) target = $region29
  $region28: #{lstm_reg_forward.1} parent=0 // pred_region
    _
  $region29: #{lstm_reg_forward.1} parent=0 // pred_fallthru
    _
  // Predicated region
  $region30: #{lstm_reg_forward.1} parent=0 // pred_check
    _
  $region31: #{lstm_reg_forward.1} parent=0 // pred_check_branch
    %1948 = sbr.rel (0) target = $region33
  $region32: #{lstm_reg_forward.1} parent=0 // pred_region
    _
  $region33: #{lstm_reg_forward.1} parent=0 // pred_fallthru
    _

</llo_original>
